<compile_context>
chip_gen: v7x
topology: tpu7x:2x2x1
jax: 0.10.0
libtpu: 0.0.40
codegen_flags: <defaults>
</compile_context>

<pallas_src>
import jax
import jax.numpy as jnp
from jax.experimental import pallas as pl
from jax.experimental.pallas import tpu as pltpu

# ---- small, shape-consistent configuration (PyTorch defaults are 512/512/(2,276)/(1,128)) ----
H_DIM = 128                    # h_dim (timestep-embedding width / hidden width)
CLIP_DIM = 128                 # clip_dim (text embedding width)
HISTORY_SHAPE = (2, 64)        # history_shape
NOISE_SHAPE = (1, 128)         # noise_shape
N_BLOCKS = 2                   # n_blocks
MAX_LEN = 128                  # positional-encoding table length (>= max timestep)

HIST_DIM = HISTORY_SHAPE[0] * HISTORY_SHAPE[1]
NOISE_DIM = NOISE_SHAPE[0] * NOISE_SHAPE[1]
COND_DIM = CLIP_DIM + HIST_DIM + NOISE_DIM          # text | history | noise
INPUT_DIM = H_DIM + COND_DIM


# ---------------------------------------------------------------------------
# elementwise helpers (EUP-friendly forms)
# ---------------------------------------------------------------------------
def _gelu(x):
    # TODO(synk): PyTorch nn.GELU() default is exact erf; this is the tanh
    # approximation (max abs deviation ~1e-3), chosen so the nonlinearity runs
    # on the EUP slot instead of a 5-term VALU polynomial.
    c = 0.7978845608028654  # sqrt(2/pi)
    return 0.5 * x * (1.0 + jnp.tanh(c * (x + 0.044715 * x * x * x)))


def _silu(x):
    # x * sigmoid(x); approximate reciprocal goes to the (otherwise idle) EUP.
    return x * pl.reciprocal(1.0 + jnp.exp(-x), approx=True)


# ---------------------------------------------------------------------------
# the kernel: pe gather + timestep-embed MLP + input_project + residual blocks + out_fc
# ---------------------------------------------------------------------------
def denoiser_kernel(ts_ref, cond_ref, pe_ref,
                    wt1_ref, bt1_ref, wt2_ref, bt2_ref,
                    wp_time_ref, wp_rest_ref, bp_ref,
                    blk_w_ref, blk_b_ref,
                    wout_ref, bout_ref,
                    out_ref):
    f32 = jnp.float32
    bf16 = jnp.bfloat16

    # pe[timesteps] as a one-hot matmul against the resident pe table (f32 to
    # preserve the table's precision; M x 128 x 128 -> negligible MXU work).
    tb = ts_ref.shape[0]
    max_len = pe_ref.shape[0]
    ts = ts_ref[...]                                                   # [tb, 1] int32
    iota = jax.lax.broadcasted_iota(jnp.int32, (tb, max_len), 1)
    onehot = (iota == ts).astype(f32)                                  # [tb, max_len]
    pe_t = jnp.dot(onehot, pe_ref[...], preferred_element_type=f32)    # [tb, H]

    # TimestepEmbedder.time_embed: Linear -> SiLU -> Linear
    t1 = jnp.dot(pe_t.astype(bf16), wt1_ref[...], preferred_element_type=f32) + bt1_ref[...]
    t1 = _silu(t1)
    emb_time = jnp.dot(t1.astype(bf16), wt2_ref[...], preferred_element_type=f32) + bt2_ref[...]

    # input_project over cat((emb_time, emb_text, emb_history, emb_noise), dim=1):
    # the concat is folded into 2 matmuls (time part + stacked conditioning part).
    h = (jnp.dot(emb_time.astype(bf16), wp_time_ref[...], preferred_element_type=f32)
         + jnp.dot(cond_ref[...].astype(bf16), wp_rest_ref[...], preferred_element_type=f32)
         + bp_ref[...])

    # MLPBlock: n_blocks residual blocks, each = GELU(Linear) -> GELU(Linear), then + residual
    for i in range(N_BLOCKS):
        r = h
        a = _gelu(jnp.dot(h.astype(bf16), blk_w_ref[2 * i],
                          preferred_element_type=f32) + blk_b_ref[2 * i])
        a = _gelu(jnp.dot(a.astype(bf16), blk_w_ref[2 * i + 1],
                          preferred_element_type=f32) + blk_b_ref[2 * i + 1])
        h = a + r

    # out_fc: Linear(h_dim -> prod(noise_shape))  (128-wide -> lane-dense store)
    out_ref[...] = jnp.dot(h.astype(bf16), wout_ref[...],
                           preferred_element_type=f32) + bout_ref[...]


# ---------------------------------------------------------------------------
# plain-JAX glue: parameter init, positional-encoding table, wrapper, reference
# ---------------------------------------------------------------------------
def make_positional_encoding(max_len, d_model):
    position = jnp.arange(max_len, dtype=jnp.float32)[:, None]
    div_term = jnp.exp(jnp.arange(0, d_model, 2, dtype=jnp.float32)
                       * (-jnp.log(10000.0) / d_model))
    angles = position * div_term
    pe = jnp.zeros((max_len, d_model), jnp.float32)
    pe = pe.at[:, 0::2].set(jnp.sin(angles))
    pe = pe.at[:, 1::2].set(jnp.cos(angles))
    return pe


def init_linear(key, in_dim, out_dim):
    # nn.Linear-style init: U(-1/sqrt(fan_in), 1/sqrt(fan_in)); weight stored
    # [in, out] in bfloat16 (HBM traffic), bias kept f32.
    kw, kb = jax.random.split(key)
    bound = 1.0 / (in_dim ** 0.5)
    w = jax.random.uniform(kw, (in_dim, out_dim), jnp.float32, -bound, bound)
    b = jax.random.uniform(kb, (1, out_dim), jnp.float32, -bound, bound)
    return w.astype(jnp.bfloat16), b


def init_params(key):
    n_linears = 3 + 2 * N_BLOCKS + 1
    keys = jax.random.split(key, n_linears)
    wt1, bt1 = init_linear(keys[0], H_DIM, H_DIM)        # time_embed[0]
    wt2, bt2 = init_linear(keys[1], H_DIM, H_DIM)        # time_embed[2]

    wp, bp = init_linear(keys[2], INPUT_DIM, H_DIM)      # input_project
    wp_time = wp[:H_DIM]                                 # rows for emb_time
    wp_rest = wp[H_DIM:]                                 # rows for cat(text, hist, noise)

    blk_w, blk_b = [], []
    for i in range(2 * N_BLOCKS):                        # 2 linears per residual block
        w, b = init_linear(keys[3 + i], H_DIM, H_DIM)
        blk_w.append(w)
        blk_b.append(b)
    blk_w = jnp.stack(blk_w)                             # [2*n_blocks, H, H]  bf16
    blk_b = jnp.stack(blk_b)                             # [2*n_blocks, 1, H]  f32

    wout, bout = init_linear(keys[3 + 2 * N_BLOCKS], H_DIM, NOISE_DIM)  # mlp.out_fc

    return dict(pe=make_positional_encoding(MAX_LEN, H_DIM),
                wt1=wt1, bt1=bt1, wt2=wt2, bt2=bt2,
                wp_time=wp_time, wp_rest=wp_rest, bp=bp,
                blk_w=blk_w, blk_b=blk_b,
                wout=wout, bout=bout)


def _round_up(x, m):
    return (x + m - 1) // m * m


def denoiser_forward(params, x_t, timesteps, y):
    """x_t: [B, 1, prod(noise_shape)]; timesteps: [B] int; y: dict of conditions."""
    B = x_t.shape[0]

    emb_text = y['text_embedding']
    if y.get('uncond', False):                           # mask_cond(force_mask=True)
        emb_text = jnp.zeros_like(emb_text)
    # (eval mode, cond_mask_prob=0.0 -> mask_cond is otherwise the identity)
    cond = jnp.concatenate(
        [emb_text,
         y['history_motion_normalized'].reshape(B, HIST_DIM),
         x_t.reshape(B, NOISE_DIM)], axis=1)             # [B, COND_DIM]
    ts = timesteps.astype(jnp.int32)

    # pad the batch to a full sublane multiple and tile it over the grid
    tile_b = min(128, _round_up(B, 8))
    pb = _round_up(B, tile_b)
    if pb != B:
        cond = jnp.pad(cond, ((0, pb - B), (0, 0)))
        ts = jnp.pad(ts, (0, pb - B))
    ts2d = ts.reshape(pb, 1)
    grid = (pb // tile_b,)

    def rows(feat):                                       # per-batch-tile block
        return pl.BlockSpec((tile_b, feat), lambda i: (i, 0))

    def resident(shape):                                  # same block every step -> stays in VMEM
        nd = len(shape)
        return pl.BlockSpec(shape, lambda i: (0,) * nd)

    in_specs = [
        rows(1),                                          # timesteps
        rows(COND_DIM),                                   # cond = text|hist|noise
        resident((MAX_LEN, H_DIM)),                       # pe table
        resident((H_DIM, H_DIM)), resident((1, H_DIM)),   # wt1, bt1
        resident((H_DIM, H_DIM)), resident((1, H_DIM)),   # wt2, bt2
        resident((H_DIM, H_DIM)),                         # wp_time
        resident((COND_DIM, H_DIM)), resident((1, H_DIM)),          # wp_rest, bp
        resident((2 * N_BLOCKS, H_DIM, H_DIM)),                     # blk_w
        resident((2 * N_BLOCKS, 1, H_DIM)),                         # blk_b
        resident((H_DIM, NOISE_DIM)), resident((1, NOISE_DIM)),     # wout, bout
    ]

    # advisory cost estimate so XLA schedules the tiny custom call tightly
    flops = 2 * pb * (MAX_LEN * H_DIM + 3 * H_DIM * H_DIM + COND_DIM * H_DIM
                      + 2 * N_BLOCKS * H_DIM * H_DIM + H_DIM * NOISE_DIM)
    transcendentals = pb * (2 * H_DIM + 4 * N_BLOCKS * H_DIM)
    weight_bytes = 2 * (3 * H_DIM * H_DIM + COND_DIM * H_DIM
                        + 2 * N_BLOCKS * H_DIM * H_DIM + H_DIM * NOISE_DIM)
    io_bytes = 4 * (MAX_LEN * H_DIM + pb * (1 + COND_DIM + NOISE_DIM)
                    + (3 + 2 * N_BLOCKS) * H_DIM + NOISE_DIM)

    out = pl.pallas_call(
        denoiser_kernel,
        out_shape=jax.ShapeDtypeStruct((pb, NOISE_DIM), jnp.float32),
        grid_spec=pltpu.PrefetchScalarGridSpec(
            num_scalar_prefetch=0,
            grid=grid,
            in_specs=in_specs,
            out_specs=rows(NOISE_DIM)),
        compiler_params=pltpu.CompilerParams(
            dimension_semantics=("parallel",)),
        cost_estimate=pl.CostEstimate(
            flops=flops, transcendentals=transcendentals,
            bytes_accessed=weight_bytes + io_bytes),
    )(ts2d, cond,
      params['pe'],
      params['wt1'], params['bt1'], params['wt2'], params['bt2'],
      params['wp_time'], params['wp_rest'], params['bp'],
      params['blk_w'], params['blk_b'],
      params['wout'], params['bout'])

    return out[:B].reshape(B, *NOISE_SHAPE)


def denoiser_reference(params, x_t, timesteps, y):
    """Pure-JAX mirror of the kernel math (bf16 weights, f32 accumulation)."""
    B = x_t.shape[0]
    f32, bf16 = jnp.float32, jnp.bfloat16

    def dot(a, w):
        return jnp.dot(a.astype(bf16), w, preferred_element_type=f32)

    def gelu(x):
        return 0.5 * x * (1.0 + jnp.tanh(0.7978845608028654 * (x + 0.044715 * x ** 3)))

    pe_t = params['pe'][timesteps]
    t1 = dot(pe_t, params['wt1']) + params['bt1']
    t1 = t1 * jax.nn.sigmoid(t1)
    emb_time = dot(t1, params['wt2']) + params['bt2']

    emb_text = y['text_embedding']
    if y.get('uncond', False):
        emb_text = jnp.zeros_like(emb_text)
    cond = jnp.concatenate(
        [emb_text,
         y['history_motion_normalized'].reshape(B, HIST_DIM),
         x_t.reshape(B, NOISE_DIM)], axis=1)

    h = dot(emb_time, params['wp_time']) + dot(cond, params['wp_rest']) + params['bp']
    for i in range(N_BLOCKS):
        r = h
        a = gelu(dot(h, params['blk_w'][2 * i]) + params['blk_b'][2 * i])
        a = gelu(dot(a, params['blk_w'][2 * i + 1]) + params['blk_b'][2 * i + 1])
        h = a + r
    out = dot(h, params['wout']) + params['bout']
    return out.reshape(B, *NOISE_SHAPE)


if __name__ == "__main__":
    key = jax.random.PRNGKey(0)
    kp, kx, kh, kt = jax.random.split(key, 4)

    params = init_params(kp)

    B = 2
    x_t = jax.random.normal(kx, (B, *NOISE_SHAPE), jnp.float32)          # [B, T=1, 128]
    timesteps = jnp.array([5, 17], dtype=jnp.int32)                      # [B]
    y = {
        'history_motion_normalized': jax.random.normal(kh, (B, *HISTORY_SHAPE), jnp.float32),
        'text_embedding': jax.random.normal(kt, (B, CLIP_DIM), jnp.float32),
    }

    out = denoiser_forward(params, x_t, timesteps, y)
    jax.block_until_ready(out)
    assert out.shape == (B, *NOISE_SHAPE) and out.dtype == jnp.float32

    ref = denoiser_reference(params, x_t, timesteps, y)
    max_err = float(jnp.max(jnp.abs(out - ref)))
    assert jnp.allclose(out, ref, rtol=5e-2, atol=5e-2), f"max abs err {max_err}"

    print("KERNEL_OK")
</pallas_src>

<mosaic_0001>
module attributes {stable_mosaic.version = 11 : i64} {
  func.func @denoiser_kernel(%arg0: i32, %arg1: memref<8x1xi32, #tpu.memory_space<vmem>>, %arg2: memref<8x384xf32, #tpu.memory_space<vmem>>, %arg3: memref<128x128xf32, #tpu.memory_space<vmem>>, %arg4: memref<128x128xbf16, #tpu.memory_space<vmem>>, %arg5: memref<1x128xf32, #tpu.memory_space<vmem>>, %arg6: memref<128x128xbf16, #tpu.memory_space<vmem>>, %arg7: memref<1x128xf32, #tpu.memory_space<vmem>>, %arg8: memref<128x128xbf16, #tpu.memory_space<vmem>>, %arg9: memref<384x128xbf16, #tpu.memory_space<vmem>>, %arg10: memref<1x128xf32, #tpu.memory_space<vmem>>, %arg11: memref<4x128x128xbf16, #tpu.memory_space<vmem>>, %arg12: memref<4x1x128xf32, #tpu.memory_space<vmem>>, %arg13: memref<128x128xbf16, #tpu.memory_space<vmem>>, %arg14: memref<1x128xf32, #tpu.memory_space<vmem>>, %arg15: memref<8x128xf32, #tpu.memory_space<vmem>>) attributes {dimension_semantics = [#tpu.dimension_semantics<parallel>], iteration_bounds = array<i64: 1>, scalar_prefetch = 0 : i64, scratch_operands = 0 : i64, tpu.core_type = #tpu.core_type<tc>, window_params = [{transform_indices = @transform_0, window_bounds = array<i64: 8, 1>}, {transform_indices = @transform_1, window_bounds = array<i64: 8, 384>}, {pipeline_mode = #tpu.pipeline_mode<synchronous>, transform_indices = @transform_2, window_bounds = array<i64: 128, 128>}, {pipeline_mode = #tpu.pipeline_mode<synchronous>, transform_indices = @transform_3, window_bounds = array<i64: 128, 128>}, {pipeline_mode = #tpu.pipeline_mode<synchronous>, transform_indices = @transform_4, window_bounds = array<i64: 1, 128>}, {pipeline_mode = #tpu.pipeline_mode<synchronous>, transform_indices = @transform_5, window_bounds = array<i64: 128, 128>}, {pipeline_mode = #tpu.pipeline_mode<synchronous>, transform_indices = @transform_6, window_bounds = array<i64: 1, 128>}, {pipeline_mode = #tpu.pipeline_mode<synchronous>, transform_indices = @transform_7, window_bounds = array<i64: 128, 128>}, {pipeline_mode = #tpu.pipeline_mode<synchronous>, transform_indices = @transform_8, window_bounds = array<i64: 384, 128>}, {pipeline_mode = #tpu.pipeline_mode<synchronous>, transform_indices = @transform_9, window_bounds = array<i64: 1, 128>}, {pipeline_mode = #tpu.pipeline_mode<synchronous>, transform_indices = @transform_10, window_bounds = array<i64: 4, 128, 128>}, {pipeline_mode = #tpu.pipeline_mode<synchronous>, transform_indices = @transform_11, window_bounds = array<i64: 4, 1, 128>}, {pipeline_mode = #tpu.pipeline_mode<synchronous>, transform_indices = @transform_12, window_bounds = array<i64: 128, 128>}, {pipeline_mode = #tpu.pipeline_mode<synchronous>, transform_indices = @transform_13, window_bounds = array<i64: 1, 128>}, {transform_indices = @transform_14, window_bounds = array<i64: 8, 128>}]} {
    %c0 = arith.constant 0 : index
    %c0_0 = arith.constant 0 : index
    %0 = vector.load %arg1[%c0, %c0_0] : memref<8x1xi32, #tpu.memory_space<vmem>>, vector<8x1xi32>
    %1 = tpu.iota {dimensions = array<i32: 1>} : vector<8x128xi32>
    %2 = vector.broadcast %0 : vector<8x1xi32> to vector<8x128xi32>
    %3 = arith.cmpi eq, %1, %2 : vector<8x128xi32>
    %4 = arith.extui %3 : vector<8x128xi1> to vector<8x128xi32>
    %5 = arith.sitofp %4 : vector<8x128xi32> to vector<8x128xf32>
    %c0_1 = arith.constant 0 : index
    %c0_2 = arith.constant 0 : index
    %6 = vector.load %arg3[%c0_1, %c0_2] : memref<128x128xf32, #tpu.memory_space<vmem>>, vector<128x128xf32>
    %cst = arith.constant dense<0.000000e+00> : vector<8x128xf32>
    %7 = tpu.matmul %5, %6, %cst {dimension_numbers = #tpu.dot_dimension_numbers<[1], [0], [0], [1], [0, 0, 1, 1], [], []>} : vector<8x128xf32>, vector<128x128xf32>, vector<8x128xf32> -> vector<8x128xf32>
    %8 = arith.truncf %7 : vector<8x128xf32> to vector<8x128xbf16>
    %c0_3 = arith.constant 0 : index
    %c0_4 = arith.constant 0 : index
    %9 = vector.load %arg4[%c0_3, %c0_4] : memref<128x128xbf16, #tpu.memory_space<vmem>>, vector<128x128xbf16>
    %cst_5 = arith.constant dense<0.000000e+00> : vector<8x128xf32>
    %10 = tpu.matmul %8, %9, %cst_5 {dimension_numbers = #tpu.dot_dimension_numbers<[1], [0], [0], [1], [0, 0, 1, 1], [], []>} : vector<8x128xbf16>, vector<128x128xbf16>, vector<8x128xf32> -> vector<8x128xf32>
    %c0_6 = arith.constant 0 : index
    %c0_7 = arith.constant 0 : index
    %11 = vector.load %arg5[%c0_6, %c0_7] : memref<1x128xf32, #tpu.memory_space<vmem>>, vector<1x128xf32>
    %12 = vector.broadcast %11 : vector<1x128xf32> to vector<8x128xf32>
    %13 = arith.addf %10, %12 : vector<8x128xf32>
    %cst_8 = arith.constant 0.000000e+00 : f32
    %14 = vector.broadcast %cst_8 : f32 to vector<8x128xf32>
    %15 = arith.subf %14, %13 : vector<8x128xf32>
    %16 = math.exp %15 : vector<8x128xf32>
    %cst_9 = arith.constant 1.000000e+00 : f32
    %17 = vector.broadcast %cst_9 : f32 to vector<8x128xf32>
    %18 = arith.addf %17, %16 : vector<8x128xf32>
    %19 = tpu.reciprocal %18 {approx = true} : vector<8x128xf32> -> vector<8x128xf32>
    %20 = arith.mulf %13, %19 : vector<8x128xf32>
    %21 = arith.truncf %20 : vector<8x128xf32> to vector<8x128xbf16>
    %c0_10 = arith.constant 0 : index
    %c0_11 = arith.constant 0 : index
    %22 = vector.load %arg6[%c0_10, %c0_11] : memref<128x128xbf16, #tpu.memory_space<vmem>>, vector<128x128xbf16>
    %cst_12 = arith.constant dense<0.000000e+00> : vector<8x128xf32>
    %23 = tpu.matmul %21, %22, %cst_12 {dimension_numbers = #tpu.dot_dimension_numbers<[1], [0], [0], [1], [0, 0, 1, 1], [], []>} : vector<8x128xbf16>, vector<128x128xbf16>, vector<8x128xf32> -> vector<8x128xf32>
    %c0_13 = arith.constant 0 : index
    %c0_14 = arith.constant 0 : index
    %24 = vector.load %arg7[%c0_13, %c0_14] : memref<1x128xf32, #tpu.memory_space<vmem>>, vector<1x128xf32>
    %25 = vector.broadcast %24 : vector<1x128xf32> to vector<8x128xf32>
    %26 = arith.addf %23, %25 : vector<8x128xf32>
    %27 = arith.truncf %26 : vector<8x128xf32> to vector<8x128xbf16>
    %c0_15 = arith.constant 0 : index
    %c0_16 = arith.constant 0 : index
    %28 = vector.load %arg8[%c0_15, %c0_16] : memref<128x128xbf16, #tpu.memory_space<vmem>>, vector<128x128xbf16>
    %cst_17 = arith.constant dense<0.000000e+00> : vector<8x128xf32>
    %29 = tpu.matmul %27, %28, %cst_17 {dimension_numbers = #tpu.dot_dimension_numbers<[1], [0], [0], [1], [0, 0, 1, 1], [], []>} : vector<8x128xbf16>, vector<128x128xbf16>, vector<8x128xf32> -> vector<8x128xf32>
    %c0_18 = arith.constant 0 : index
    %c0_19 = arith.constant 0 : index
    %30 = vector.load %arg2[%c0_18, %c0_19] : memref<8x384xf32, #tpu.memory_space<vmem>>, vector<8x384xf32>
    %31 = arith.truncf %30 : vector<8x384xf32> to vector<8x384xbf16>
    %c0_20 = arith.constant 0 : index
    %c0_21 = arith.constant 0 : index
    %32 = vector.load %arg9[%c0_20, %c0_21] : memref<384x128xbf16, #tpu.memory_space<vmem>>, vector<384x128xbf16>
    %cst_22 = arith.constant dense<0.000000e+00> : vector<8x128xf32>
    %33 = tpu.matmul %31, %32, %cst_22 {dimension_numbers = #tpu.dot_dimension_numbers<[1], [0], [0], [1], [0, 0, 1, 1], [], []>} : vector<8x384xbf16>, vector<384x128xbf16>, vector<8x128xf32> -> vector<8x128xf32>
    %34 = arith.addf %29, %33 : vector<8x128xf32>
    %c0_23 = arith.constant 0 : index
    %c0_24 = arith.constant 0 : index
    %35 = vector.load %arg10[%c0_23, %c0_24] : memref<1x128xf32, #tpu.memory_space<vmem>>, vector<1x128xf32>
    %36 = vector.broadcast %35 : vector<1x128xf32> to vector<8x128xf32>
    %37 = arith.addf %34, %36 : vector<8x128xf32>
    %38 = arith.truncf %37 : vector<8x128xf32> to vector<8x128xbf16>
    %c0_25 = arith.constant 0 : index
    %c0_26 = arith.constant 0 : index
    %c0_27 = arith.constant 0 : index
    %39 = vector.load %arg11[%c0_25, %c0_26, %c0_27] : memref<4x128x128xbf16, #tpu.memory_space<vmem>>, vector<1x128x128xbf16>
    %40 = vector.shape_cast %39 : vector<1x128x128xbf16> to vector<128x128xbf16>
    %cst_28 = arith.constant dense<0.000000e+00> : vector<8x128xf32>
    %41 = tpu.matmul %38, %40, %cst_28 {dimension_numbers = #tpu.dot_dimension_numbers<[1], [0], [0], [1], [0, 0, 1, 1], [], []>} : vector<8x128xbf16>, vector<128x128xbf16>, vector<8x128xf32> -> vector<8x128xf32>
    %c0_29 = arith.constant 0 : index
    %c0_30 = arith.constant 0 : index
    %c0_31 = arith.constant 0 : index
    %42 = vector.load %arg12[%c0_29, %c0_30, %c0_31] : memref<4x1x128xf32, #tpu.memory_space<vmem>>, vector<1x1x128xf32>
    %43 = vector.shape_cast %42 : vector<1x1x128xf32> to vector<1x128xf32>
    %44 = vector.broadcast %43 : vector<1x128xf32> to vector<8x128xf32>
    %45 = arith.addf %41, %44 : vector<8x128xf32>
    %cst_32 = arith.constant 5.000000e-01 : f32
    %46 = vector.broadcast %cst_32 : f32 to vector<8x128xf32>
    %47 = arith.mulf %46, %45 : vector<8x128xf32>
    %cst_33 = arith.constant 4.471500e-02 : f32
    %48 = vector.broadcast %cst_33 : f32 to vector<8x128xf32>
    %49 = arith.mulf %48, %45 : vector<8x128xf32>
    %50 = arith.mulf %49, %45 : vector<8x128xf32>
    %51 = arith.mulf %50, %45 : vector<8x128xf32>
    %52 = arith.addf %45, %51 : vector<8x128xf32>
    %cst_34 = arith.constant 0.797884583 : f32
    %53 = vector.broadcast %cst_34 : f32 to vector<8x128xf32>
    %54 = arith.mulf %53, %52 : vector<8x128xf32>
    %55 = math.tanh %54 : vector<8x128xf32>
    %cst_35 = arith.constant 1.000000e+00 : f32
    %56 = vector.broadcast %cst_35 : f32 to vector<8x128xf32>
    %57 = arith.addf %56, %55 : vector<8x128xf32>
    %58 = arith.mulf %47, %57 : vector<8x128xf32>
    %59 = arith.truncf %58 : vector<8x128xf32> to vector<8x128xbf16>
    %c1 = arith.constant 1 : index
    %c0_36 = arith.constant 0 : index
    %c0_37 = arith.constant 0 : index
    %60 = vector.load %arg11[%c1, %c0_36, %c0_37] : memref<4x128x128xbf16, #tpu.memory_space<vmem>>, vector<1x128x128xbf16>
    %61 = vector.shape_cast %60 : vector<1x128x128xbf16> to vector<128x128xbf16>
    %cst_38 = arith.constant dense<0.000000e+00> : vector<8x128xf32>
    %62 = tpu.matmul %59, %61, %cst_38 {dimension_numbers = #tpu.dot_dimension_numbers<[1], [0], [0], [1], [0, 0, 1, 1], [], []>} : vector<8x128xbf16>, vector<128x128xbf16>, vector<8x128xf32> -> vector<8x128xf32>
    %c1_39 = arith.constant 1 : index
    %c0_40 = arith.constant 0 : index
    %c0_41 = arith.constant 0 : index
    %63 = vector.load %arg12[%c1_39, %c0_40, %c0_41] : memref<4x1x128xf32, #tpu.memory_space<vmem>>, vector<1x1x128xf32>
    %64 = vector.shape_cast %63 : vector<1x1x128xf32> to vector<1x128xf32>
    %65 = vector.broadcast %64 : vector<1x128xf32> to vector<8x128xf32>
    %66 = arith.addf %62, %65 : vector<8x128xf32>
    %cst_42 = arith.constant 5.000000e-01 : f32
    %67 = vector.broadcast %cst_42 : f32 to vector<8x128xf32>
    %68 = arith.mulf %67, %66 : vector<8x128xf32>
    %cst_43 = arith.constant 4.471500e-02 : f32
    %69 = vector.broadcast %cst_43 : f32 to vector<8x128xf32>
    %70 = arith.mulf %69, %66 : vector<8x128xf32>
    %71 = arith.mulf %70, %66 : vector<8x128xf32>
    %72 = arith.mulf %71, %66 : vector<8x128xf32>
    %73 = arith.addf %66, %72 : vector<8x128xf32>
    %cst_44 = arith.constant 0.797884583 : f32
    %74 = vector.broadcast %cst_44 : f32 to vector<8x128xf32>
    %75 = arith.mulf %74, %73 : vector<8x128xf32>
    %76 = math.tanh %75 : vector<8x128xf32>
    %cst_45 = arith.constant 1.000000e+00 : f32
    %77 = vector.broadcast %cst_45 : f32 to vector<8x128xf32>
    %78 = arith.addf %77, %76 : vector<8x128xf32>
    %79 = arith.mulf %68, %78 : vector<8x128xf32>
    %80 = arith.addf %79, %37 : vector<8x128xf32>
    %81 = arith.truncf %80 : vector<8x128xf32> to vector<8x128xbf16>
    %c2 = arith.constant 2 : index
    %c0_46 = arith.constant 0 : index
    %c0_47 = arith.constant 0 : index
    %82 = vector.load %arg11[%c2, %c0_46, %c0_47] : memref<4x128x128xbf16, #tpu.memory_space<vmem>>, vector<1x128x128xbf16>
    %83 = vector.shape_cast %82 : vector<1x128x128xbf16> to vector<128x128xbf16>
    %cst_48 = arith.constant dense<0.000000e+00> : vector<8x128xf32>
    %84 = tpu.matmul %81, %83, %cst_48 {dimension_numbers = #tpu.dot_dimension_numbers<[1], [0], [0], [1], [0, 0, 1, 1], [], []>} : vector<8x128xbf16>, vector<128x128xbf16>, vector<8x128xf32> -> vector<8x128xf32>
    %c2_49 = arith.constant 2 : index
    %c0_50 = arith.constant 0 : index
    %c0_51 = arith.constant 0 : index
    %85 = vector.load %arg12[%c2_49, %c0_50, %c0_51] : memref<4x1x128xf32, #tpu.memory_space<vmem>>, vector<1x1x128xf32>
    %86 = vector.shape_cast %85 : vector<1x1x128xf32> to vector<1x128xf32>
    %87 = vector.broadcast %86 : vector<1x128xf32> to vector<8x128xf32>
    %88 = arith.addf %84, %87 : vector<8x128xf32>
    %cst_52 = arith.constant 5.000000e-01 : f32
    %89 = vector.broadcast %cst_52 : f32 to vector<8x128xf32>
    %90 = arith.mulf %89, %88 : vector<8x128xf32>
    %cst_53 = arith.constant 4.471500e-02 : f32
    %91 = vector.broadcast %cst_53 : f32 to vector<8x128xf32>
    %92 = arith.mulf %91, %88 : vector<8x128xf32>
    %93 = arith.mulf %92, %88 : vector<8x128xf32>
    %94 = arith.mulf %93, %88 : vector<8x128xf32>
    %95 = arith.addf %88, %94 : vector<8x128xf32>
    %cst_54 = arith.constant 0.797884583 : f32
    %96 = vector.broadcast %cst_54 : f32 to vector<8x128xf32>
    %97 = arith.mulf %96, %95 : vector<8x128xf32>
    %98 = math.tanh %97 : vector<8x128xf32>
    %cst_55 = arith.constant 1.000000e+00 : f32
    %99 = vector.broadcast %cst_55 : f32 to vector<8x128xf32>
    %100 = arith.addf %99, %98 : vector<8x128xf32>
    %101 = arith.mulf %90, %100 : vector<8x128xf32>
    %102 = arith.truncf %101 : vector<8x128xf32> to vector<8x128xbf16>
    %c3 = arith.constant 3 : index
    %c0_56 = arith.constant 0 : index
    %c0_57 = arith.constant 0 : index
    %103 = vector.load %arg11[%c3, %c0_56, %c0_57] : memref<4x128x128xbf16, #tpu.memory_space<vmem>>, vector<1x128x128xbf16>
    %104 = vector.shape_cast %103 : vector<1x128x128xbf16> to vector<128x128xbf16>
    %cst_58 = arith.constant dense<0.000000e+00> : vector<8x128xf32>
    %105 = tpu.matmul %102, %104, %cst_58 {dimension_numbers = #tpu.dot_dimension_numbers<[1], [0], [0], [1], [0, 0, 1, 1], [], []>} : vector<8x128xbf16>, vector<128x128xbf16>, vector<8x128xf32> -> vector<8x128xf32>
    %c3_59 = arith.constant 3 : index
    %c0_60 = arith.constant 0 : index
    %c0_61 = arith.constant 0 : index
    %106 = vector.load %arg12[%c3_59, %c0_60, %c0_61] : memref<4x1x128xf32, #tpu.memory_space<vmem>>, vector<1x1x128xf32>
    %107 = vector.shape_cast %106 : vector<1x1x128xf32> to vector<1x128xf32>
    %108 = vector.broadcast %107 : vector<1x128xf32> to vector<8x128xf32>
    %109 = arith.addf %105, %108 : vector<8x128xf32>
    %cst_62 = arith.constant 5.000000e-01 : f32
    %110 = vector.broadcast %cst_62 : f32 to vector<8x128xf32>
    %111 = arith.mulf %110, %109 : vector<8x128xf32>
    %cst_63 = arith.constant 4.471500e-02 : f32
    %112 = vector.broadcast %cst_63 : f32 to vector<8x128xf32>
    %113 = arith.mulf %112, %109 : vector<8x128xf32>
    %114 = arith.mulf %113, %109 : vector<8x128xf32>
    %115 = arith.mulf %114, %109 : vector<8x128xf32>
    %116 = arith.addf %109, %115 : vector<8x128xf32>
    %cst_64 = arith.constant 0.797884583 : f32
    %117 = vector.broadcast %cst_64 : f32 to vector<8x128xf32>
    %118 = arith.mulf %117, %116 : vector<8x128xf32>
    %119 = math.tanh %118 : vector<8x128xf32>
    %cst_65 = arith.constant 1.000000e+00 : f32
    %120 = vector.broadcast %cst_65 : f32 to vector<8x128xf32>
    %121 = arith.addf %120, %119 : vector<8x128xf32>
    %122 = arith.mulf %111, %121 : vector<8x128xf32>
    %123 = arith.addf %122, %80 : vector<8x128xf32>
    %124 = arith.truncf %123 : vector<8x128xf32> to vector<8x128xbf16>
    %c0_66 = arith.constant 0 : index
    %c0_67 = arith.constant 0 : index
    %125 = vector.load %arg13[%c0_66, %c0_67] : memref<128x128xbf16, #tpu.memory_space<vmem>>, vector<128x128xbf16>
    %cst_68 = arith.constant dense<0.000000e+00> : vector<8x128xf32>
    %126 = tpu.matmul %124, %125, %cst_68 {dimension_numbers = #tpu.dot_dimension_numbers<[1], [0], [0], [1], [0, 0, 1, 1], [], []>} : vector<8x128xbf16>, vector<128x128xbf16>, vector<8x128xf32> -> vector<8x128xf32>
    %c0_69 = arith.constant 0 : index
    %c0_70 = arith.constant 0 : index
    %127 = vector.load %arg14[%c0_69, %c0_70] : memref<1x128xf32, #tpu.memory_space<vmem>>, vector<1x128xf32>
    %128 = vector.broadcast %127 : vector<1x128xf32> to vector<8x128xf32>
    %129 = arith.addf %126, %128 : vector<8x128xf32>
    %c0_71 = arith.constant 0 : index
    %c0_72 = arith.constant 0 : index
    %130 = vector.load %arg15[%c0_71, %c0_72] : memref<8x128xf32, #tpu.memory_space<vmem>>, vector<8x128xf32>
    tpu.vector_store %arg15[%c0_71, %c0_72], %129 {strides = array<i32>} : memref<8x128xf32, #tpu.memory_space<vmem>>, vector<8x128xf32>,
    return
  }
  func.func @transform_0(%arg0: i32) -> (i32, i32) {
    %c0_i32 = arith.constant 0 : i32
    %c0_i32_0 = arith.constant 0 : i32
    return %arg0, %c0_i32 : i32, i32
  }
  func.func @transform_1(%arg0: i32) -> (i32, i32) {
    %c0_i32 = arith.constant 0 : i32
    %c0_i32_0 = arith.constant 0 : i32
    return %arg0, %c0_i32 : i32, i32
  }
  func.func @transform_2(%arg0: i32) -> (i32, i32) {
    %c0_i32 = arith.constant 0 : i32
    %c0_i32_0 = arith.constant 0 : i32
    %c0_i32_1 = arith.constant 0 : i32
    return %c0_i32, %c0_i32_0 : i32, i32
  }
  func.func @transform_3(%arg0: i32) -> (i32, i32) {
    %c0_i32 = arith.constant 0 : i32
    %c0_i32_0 = arith.constant 0 : i32
    %c0_i32_1 = arith.constant 0 : i32
    return %c0_i32, %c0_i32_0 : i32, i32
  }
  func.func @transform_4(%arg0: i32) -> (i32, i32) {
    %c0_i32 = arith.constant 0 : i32
    %c0_i32_0 = arith.constant 0 : i32
    %c0_i32_1 = arith.constant 0 : i32
    return %c0_i32, %c0_i32_0 : i32, i32
  }
  func.func @transform_5(%arg0: i32) -> (i32, i32) {
    %c0_i32 = arith.constant 0 : i32
    %c0_i32_0 = arith.constant 0 : i32
    %c0_i32_1 = arith.constant 0 : i32
    return %c0_i32, %c0_i32_0 : i32, i32
  }
  func.func @transform_6(%arg0: i32) -> (i32, i32) {
    %c0_i32 = arith.constant 0 : i32
    %c0_i32_0 = arith.constant 0 : i32
    %c0_i32_1 = arith.constant 0 : i32
    return %c0_i32, %c0_i32_0 : i32, i32
  }
  func.func @transform_7(%arg0: i32) -> (i32, i32) {
    %c0_i32 = arith.constant 0 : i32
    %c0_i32_0 = arith.constant 0 : i32
    %c0_i32_1 = arith.constant 0 : i32
    return %c0_i32, %c0_i32_0 : i32, i32
  }
  func.func @transform_8(%arg0: i32) -> (i32, i32) {
    %c0_i32 = arith.constant 0 : i32
    %c0_i32_0 = arith.constant 0 : i32
    %c0_i32_1 = arith.constant 0 : i32
    return %c0_i32, %c0_i32_0 : i32, i32
  }
  func.func @transform_9(%arg0: i32) -> (i32, i32) {
    %c0_i32 = arith.constant 0 : i32
    %c0_i32_0 = arith.constant 0 : i32
    %c0_i32_1 = arith.constant 0 : i32
    return %c0_i32, %c0_i32_0 : i32, i32
  }
  func.func @transform_10(%arg0: i32) -> (i32, i32, i32) {
    %c0_i32 = arith.constant 0 : i32
    %c0_i32_0 = arith.constant 0 : i32
    %c0_i32_1 = arith.constant 0 : i32
    %c0_i32_2 = arith.constant 0 : i32
    return %c0_i32, %c0_i32_0, %c0_i32_1 : i32, i32, i32
  }
  func.func @transform_11(%arg0: i32) -> (i32, i32, i32) {
    %c0_i32 = arith.constant 0 : i32
    %c0_i32_0 = arith.constant 0 : i32
    %c0_i32_1 = arith.constant 0 : i32
    %c0_i32_2 = arith.constant 0 : i32
    return %c0_i32, %c0_i32_0, %c0_i32_1 : i32, i32, i32
  }
  func.func @transform_12(%arg0: i32) -> (i32, i32) {
    %c0_i32 = arith.constant 0 : i32
    %c0_i32_0 = arith.constant 0 : i32
    %c0_i32_1 = arith.constant 0 : i32
    return %c0_i32, %c0_i32_0 : i32, i32
  }
  func.func @transform_13(%arg0: i32) -> (i32, i32) {
    %c0_i32 = arith.constant 0 : i32
    %c0_i32_0 = arith.constant 0 : i32
    %c0_i32_1 = arith.constant 0 : i32
    return %c0_i32, %c0_i32_0 : i32, i32
  }
  func.func @transform_14(%arg0: i32) -> (i32, i32) {
    %c0_i32 = arith.constant 0 : i32
    %c0_i32_0 = arith.constant 0 : i32
    return %arg0, %c0_i32 : i32, i32
  }
}

</mosaic_0001>

<llo_original>
// kernel: tpu_custom_call.1
$region0: #{tpu_custom_call.1}
  #allocation0 [shape = 'u32[]', space=smem, size = 0x4, offset = 0x4, fixed_abs, tag = 'smem constant byte address 0x4 - core index']
  #allocation1 [shape = 'u32[144,128]{1,0:T(1,128)}', space=vmem, size = 0x12000, scoped, tag = 'internal scratch']
  %s0 = inlined_call_operand.vmem [shape: s32[8,1], index: 0, kind: input, shape index: {}]
  %s1 = inlined_call_operand.hbm [shape: f32[8,384], index: 1, kind: input, shape index: {}]
  %s2 = inlined_call_operand.hbm [shape: f32[128,128], index: 2, kind: input, shape index: {}]
  %s3 = inlined_call_operand.hbm [shape: bf16[128,128], index: 3, kind: input, shape index: {}]
  %s4 = inlined_call_operand.vmem [shape: f32[1,128], index: 4, kind: input, shape index: {}]
  %s5 = inlined_call_operand.hbm [shape: bf16[128,128], index: 5, kind: input, shape index: {}]
  %s6 = inlined_call_operand.vmem [shape: f32[1,128], index: 6, kind: input, shape index: {}]
  %s7 = inlined_call_operand.hbm [shape: bf16[128,128], index: 7, kind: input, shape index: {}]
  %s8 = inlined_call_operand.hbm [shape: bf16[384,128], index: 8, kind: input, shape index: {}]
  %s9 = inlined_call_operand.vmem [shape: f32[1,128], index: 9, kind: input, shape index: {}]
  %s10 = inlined_call_operand.hbm [shape: bf16[4,128,128], index: 10, kind: input, shape index: {}]
  %s11 = inlined_call_operand.vmem [shape: f32[4,1,128], index: 11, kind: input, shape index: {}]
  %s12 = inlined_call_operand.hbm [shape: bf16[128,128], index: 12, kind: input, shape index: {}]
  %s13 = inlined_call_operand.vmem [shape: f32[1,128], index: 13, kind: input, shape index: {}]
  %s14 = inlined_call_operand.hbm [shape: f32[8,128], index: 14, kind: output, shape index: {}]
  %s15 = sld [smem:[#allocation0]]
  $region98: #{tpu_custom_call.1} parent=0
    _
  %s17 = ssub.s32 1, %s15
  %s18 = scalar_select 0, %s17, %s15
  $region1: #{tpu_custom_call.1} parent=0
    #allocation2 [shape = 'u8[12288]{0}', space=vmem, size = 0x3000, scoped, tag = 'input window, operand 1, single buffered']
    #allocation3 [shape = 's32[1]{0}', space=sflag, size = 0x4, scoped, tag = 'scoped memory for tpu_custom_call.1']
    #allocation4 [shape = 's32[1]{0}', space=sflag, size = 0x4, scoped, tag = 'scoped memory for tpu_custom_call.1']
    #allocation5 [shape = 'u8[65536]{0}', space=vmem, size = 0x10000, scoped, tag = 'input window, operand 2, single buffered']
    #allocation6 [shape = 's32[1]{0}', space=sflag, size = 0x4, scoped, tag = 'scoped memory for tpu_custom_call.1']
    #allocation7 [shape = 'u8[32768]{0}', space=vmem, size = 0x8000, scoped, tag = 'input window, operand 3, single buffered']
    #allocation8 [shape = 'u8[32768]{0}', space=vmem, size = 0x8000, scoped, tag = 'input window, operand 5, single buffered']
    #allocation9 [shape = 's32[1]{0}', space=sflag, size = 0x4, scoped, tag = 'scoped memory for tpu_custom_call.1']
    #allocation10 [shape = 'u8[32768]{0}', space=vmem, size = 0x8000, scoped, tag = 'input window, operand 7, single buffered']
    #allocation11 [shape = 'u8[98304]{0}', space=vmem, size = 0x18000, scoped, tag = 'input window, operand 8, single buffered']
    #allocation12 [shape = 's32[1]{0}', space=sflag, size = 0x4, scoped, tag = 'scoped memory for tpu_custom_call.1']
    #allocation13 [shape = 'u8[131072]{0}', space=vmem, size = 0x20000, scoped, tag = 'input window, operand 10, single buffered']
    #allocation14 [shape = 'u8[32768]{0}', space=vmem, size = 0x8000, scoped, tag = 'input window, operand 12, single buffered']
    #allocation15 [shape = 's32[1]{0}', space=sflag, size = 0x4, scoped, tag = 'scoped memory for tpu_custom_call.1']
    #allocation16 [shape = 'u8[4096]{0}', space=vmem, size = 0x1000, scoped, tag = 'output window, operand 0, single buffered']
    %19 = vsyncpa [#allocation3], 0
    %20 = vsyncpa [#allocation6], 0
    %21 = vsyncpa [#allocation9], 0
    %22 = vsyncpa [#allocation12], 0
    %23 = vsyncpa [#allocation15], 0
    %24 = vsyncpa [#allocation4], 0
    // Predicated region
    $region2: #{tpu_custom_call.1} parent=1 // pred_check
      _
    $region3: #{tpu_custom_call.1} parent=1 // pred_check_branch
      %26 = sbr.rel (0) target = $region5
    $region4: #{tpu_custom_call.1} parent=1 // pred_region
      _
    $region5: #{tpu_custom_call.1} parent=1 // pred_fallthru
      _
    // Predicated region
    $region6: #{tpu_custom_call.1} parent=1 // pred_check
      _
    $region7: #{tpu_custom_call.1} parent=1 // pred_check_branch
      %28 = sbr.rel (0) target = $region9
    $region8: #{tpu_custom_call.1} parent=1 // pred_region
      %s30 = ssub.s32 384, 384
      %31 = vsyncadd [#allocation3], %s30
      %s33 = sshll.u32 [#allocation2], 4
      %s34 = int_to_ptr.vmem [resolvable:$true] %s33
      %36 = dma.hbm_to_vmem [thread:$0]  %s1, 384, %s34, [#allocation3]
    $region9: #{tpu_custom_call.1} parent=1 // pred_fallthru
      _
    // Predicated region
    $region10: #{tpu_custom_call.1} parent=1 // pred_check
      _
    $region11: #{tpu_custom_call.1} parent=1 // pred_check_branch
      %38 = sbr.rel (0) target = $region13
    $region12: #{tpu_custom_call.1} parent=1 // pred_region
      %s40 = ssub.s32 2048, 2048
      %41 = vsyncadd [#allocation6], %s40
      %s42 = sshll.u32 [#allocation5], 4
      %s43 = int_to_ptr.vmem [resolvable:$true] %s42
      %48 = dma.hbm_to_vmem [thread:$0]  %s2, 2048, %s43, [#allocation6], 128, 128, 8
    $region13: #{tpu_custom_call.1} parent=1 // pred_fallthru
      _
    // Predicated region
    $region14: #{tpu_custom_call.1} parent=1 // pred_check
      _
    $region15: #{tpu_custom_call.1} parent=1 // pred_check_branch
      %50 = sbr.rel (0) target = $region17
    $region16: #{tpu_custom_call.1} parent=1 // pred_region
      %s52 = ssub.s32 1024, 1024
      %53 = vsyncadd [#allocation6], %s52
      %s54 = sshll.u32 [#allocation7], 4
      %s55 = int_to_ptr.vmem [resolvable:$true] %s54
      %60 = dma.hbm_to_vmem [thread:$0]  %s3, 1024, %s55, [#allocation6], 64, 64, 4
    $region17: #{tpu_custom_call.1} parent=1 // pred_fallthru
      _
    // Predicated region
    $region18: #{tpu_custom_call.1} parent=1 // pred_check
      _
    $region19: #{tpu_custom_call.1} parent=1 // pred_check_branch
      %62 = sbr.rel (0) target = $region21
    $region20: #{tpu_custom_call.1} parent=1 // pred_region
      _
    $region21: #{tpu_custom_call.1} parent=1 // pred_fallthru
      _
    // Predicated region
    $region22: #{tpu_custom_call.1} parent=1 // pred_check
      _
    $region23: #{tpu_custom_call.1} parent=1 // pred_check_branch
      %64 = sbr.rel (0) target = $region25
    $region24: #{tpu_custom_call.1} parent=1 // pred_region
      %s66 = ssub.s32 1024, 1024
      %67 = vsyncadd [#allocation9], %s66
      %s68 = sshll.u32 [#allocation8], 4
      %s69 = int_to_ptr.vmem [resolvable:$true] %s68
      %74 = dma.hbm_to_vmem [thread:$0]  %s5, 1024, %s69, [#allocation9], 64, 64, 4
    $region25: #{tpu_custom_call.1} parent=1 // pred_fallthru
      _
    // Predicated region
    $region26: #{tpu_custom_call.1} parent=1 // pred_check
      _
    $region27: #{tpu_custom_call.1} parent=1 // pred_check_branch
      %76 = sbr.rel (0) target = $region29
    $region28: #{tpu_custom_call.1} parent=1 // pred_region
      _
    $region29: #{tpu_custom_call.1} parent=1 // pred_fallthru
      _
    // Predicated region
    $region30: #{tpu_custom_call.1} parent=1 // pred_check
      _
    $region31: #{tpu_custom_call.1} parent=1 // pred_check_branch
      %78 = sbr.rel (0) target = $region33
    $region32: #{tpu_custom_call.1} parent=1 // pred_region
      %s80 = ssub.s32 1024, 1024
      %81 = vsyncadd [#allocation9], %s80
      %s82 = sshll.u32 [#allocation10], 4
      %s83 = int_to_ptr.vmem [resolvable:$true] %s82
      %88 = dma.hbm_to_vmem [thread:$0]  %s7, 1024, %s83, [#allocation9], 64, 64, 4
    $region33: #{tpu_custom_call.1} parent=1 // pred_fallthru
      _
    // Predicated region
    $region34: #{tpu_custom_call.1} parent=1 // pred_check
      _
    $region35: #{tpu_custom_call.1} parent=1 // pred_check_branch
      %90 = sbr.rel (0) target = $region37
    $region36: #{tpu_custom_call.1} parent=1 // pred_region
      %s92 = ssub.s32 3072, 3072
      %93 = vsyncadd [#allocation12], %s92
      %s94 = sshll.u32 [#allocation11], 4
      %s95 = int_to_ptr.vmem [resolvable:$true] %s94
      %100 = dma.hbm_to_vmem [thread:$0]  %s8, 3072, %s95, [#allocation12], 64, 64, 4
    $region37: #{tpu_custom_call.1} parent=1 // pred_fallthru
      _
    // Predicated region
    $region38: #{tpu_custom_call.1} parent=1 // pred_check
      _
    $region39: #{tpu_custom_call.1} parent=1 // pred_check_branch
      %102 = sbr.rel (0) target = $region41
    $region40: #{tpu_custom_call.1} parent=1 // pred_region
      _
    $region41: #{tpu_custom_call.1} parent=1 // pred_fallthru
      _
    // Predicated region
    $region42: #{tpu_custom_call.1} parent=1 // pred_check
      _
    $region43: #{tpu_custom_call.1} parent=1 // pred_check_branch
      %104 = sbr.rel (0) target = $region45
    $region44: #{tpu_custom_call.1} parent=1 // pred_region
      %s106 = ssub.s32 4096, 4096
      %107 = vsyncadd [#allocation12], %s106
      %s108 = sshll.u32 [#allocation13], 4
      %s109 = int_to_ptr.vmem [resolvable:$true] %s108
      %114 = dma.hbm_to_vmem [thread:$0]  %s10, 4096, %s109, [#allocation12], 64, 64, 4
    $region45: #{tpu_custom_call.1} parent=1 // pred_fallthru
      _
    // Predicated region
    $region46: #{tpu_custom_call.1} parent=1 // pred_check
      _
    $region47: #{tpu_custom_call.1} parent=1 // pred_check_branch
      %116 = sbr.rel (0) target = $region49
    $region48: #{tpu_custom_call.1} parent=1 // pred_region
      _
    $region49: #{tpu_custom_call.1} parent=1 // pred_fallthru
      _
    // Predicated region
    $region50: #{tpu_custom_call.1} parent=1 // pred_check
      _
    $region51: #{tpu_custom_call.1} parent=1 // pred_check_branch
      %118 = sbr.rel (0) target = $region53
    $region52: #{tpu_custom_call.1} parent=1 // pred_region
      %s120 = ssub.s32 1024, 1024
      %121 = vsyncadd [#allocation15], %s120
      %s122 = sshll.u32 [#allocation14], 4
      %s123 = int_to_ptr.vmem [resolvable:$true] %s122
      %128 = dma.hbm_to_vmem [thread:$0]  %s12, 1024, %s123, [#allocation15], 64, 64, 4
    $region53: #{tpu_custom_call.1} parent=1 // pred_fallthru
      _
    // Predicated region
    $region54: #{tpu_custom_call.1} parent=1 // pred_check
      _
    $region55: #{tpu_custom_call.1} parent=1 // pred_check_branch
      %130 = sbr.rel (0) target = $region57
    $region56: #{tpu_custom_call.1} parent=1 // pred_region
      _
    $region57: #{tpu_custom_call.1} parent=1 // pred_fallthru
      _
    // Predicated region
    $region58: #{tpu_custom_call.1} parent=1 // pred_check
      _
    $region59: #{tpu_custom_call.1} parent=1 // pred_check_branch
      %132 = sbr.rel (0) target = $region61
    $region60: #{tpu_custom_call.1} parent=1 // pred_region
      %133 = dma.done [#allocation3], 384
    $region61: #{tpu_custom_call.1} parent=1 // pred_fallthru
      _
    // Predicated region
    $region62: #{tpu_custom_call.1} parent=1 // pred_check
      _
    $region63: #{tpu_custom_call.1} parent=1 // pred_check_branch
      %135 = sbr.rel (0) target = $region65
    $region64: #{tpu_custom_call.1} parent=1 // pred_region
      %136 = dma.done [#allocation6], 2048
    $region65: #{tpu_custom_call.1} parent=1 // pred_fallthru
      _
    // Predicated region
    $region66: #{tpu_custom_call.1} parent=1 // pred_check
      _
    $region67: #{tpu_custom_call.1} parent=1 // pred_check_branch
      %138 = sbr.rel (0) target = $region69
    $region68: #{tpu_custom_call.1} parent=1 // pred_region
      %139 = dma.done [#allocation6], 1024
    $region69: #{tpu_custom_call.1} parent=1 // pred_fallthru
      _
    // Predicated region
    $region70: #{tpu_custom_call.1} parent=1 // pred_check
      _
    $region71: #{tpu_custom_call.1} parent=1 // pred_check_branch
      %141 = sbr.rel (0) target = $region73
    $region72: #{tpu_custom_call.1} parent=1 // pred_region
      %142 = dma.done [#allocation9], 1024
    $region73: #{tpu_custom_call.1} parent=1 // pred_fallthru
      _
    // Predicated region
    $region74: #{tpu_custom_call.1} parent=1 // pred_check
      _
    $region75: #{tpu_custom_call.1} parent=1 // pred_check_branch
      %144 = sbr.rel (0) target = $region77
    $region76: #{tpu_custom_call.1} parent=1 // pred_region
      %145 = dma.done [#allocation9], 1024
    $region77: #{tpu_custom_call.1} parent=1 // pred_fallthru
      _
    // Predicated region
    $region78: #{tpu_custom_call.1} parent=1 // pred_check
      _
    $region79: #{tpu_custom_call.1} parent=1 // pred_check_branch
      %147 = sbr.rel (0) target = $region81
    $region80: #{tpu_custom_call.1} parent=1 // pred_region
      %148 = dma.done [#allocation12], 3072
    $region81: #{tpu_custom_call.1} parent=1 // pred_fallthru
      _
    // Predicated region
    $region82: #{tpu_custom_call.1} parent=1 // pred_check
      _
    $region83: #{tpu_custom_call.1} parent=1 // pred_check_branch
      %150 = sbr.rel (0) target = $region85
    $region84: #{tpu_custom_call.1} parent=1 // pred_region
      %151 = dma.done [#allocation12], 4096
    $region85: #{tpu_custom_call.1} parent=1 // pred_fallthru
      _
    // Predicated region
    $region86: #{tpu_custom_call.1} parent=1 // pred_check
      _
    $region87: #{tpu_custom_call.1} parent=1 // pred_check_branch
      %153 = sbr.rel (0) target = $region89
    $region88: #{tpu_custom_call.1} parent=1 // pred_region
      %154 = dma.done [#allocation15], 1024
    $region89: #{tpu_custom_call.1} parent=1 // pred_fallthru
      _
    %v156 = vld [vmem:[%s0] sm:$0xff]
    %v157 = vlaneseq
    %v158 = vand.u32 %v157, 127
    %159 = vset.pattern.permute.xlu0 0
    %160 = vperm.xlu0 %159, %v156
    %v161 = vpop.permute.xlu0 %160
    %vm162 = vcmp.eq.s32.totalorder %v158, %v161
    %v163 = vsel %vm162, 1, 0
    %v164 = vcvt.s32.f32 %v163
    %v165 = vld [vmem:[#allocation5] sm:$0xff]
    %v166 = vld [vmem:[#allocation5 + $0x8] sm:$0xff]
    %v167 = vld [vmem:[#allocation5 + $0x10] sm:$0xff]
    %v168 = vld [vmem:[#allocation5 + $0x18] sm:$0xff]
    %v169 = vld [vmem:[#allocation5 + $0x20] sm:$0xff]
    %v170 = vld [vmem:[#allocation5 + $0x28] sm:$0xff]
    %v171 = vld [vmem:[#allocation5 + $0x30] sm:$0xff]
    %v172 = vld [vmem:[#allocation5 + $0x38] sm:$0xff]
    %v173 = vld [vmem:[#allocation5 + $0x40] sm:$0xff]
    %v174 = vld [vmem:[#allocation5 + $0x48] sm:$0xff]
    %v175 = vld [vmem:[#allocation5 + $0x50] sm:$0xff]
    %v176 = vld [vmem:[#allocation5 + $0x58] sm:$0xff]
    %v177 = vld [vmem:[#allocation5 + $0x60] sm:$0xff]
    %v178 = vld [vmem:[#allocation5 + $0x68] sm:$0xff]
    %v179 = vld [vmem:[#allocation5 + $0x70] sm:$0xff]
    %v180 = vld [vmem:[#allocation5 + $0x78] sm:$0xff]
    %181 = vmatprep.subr.mxu0 0.0
    %182 = vmatpush1.msra.mxu0 %v165
    %183 = vmatprep.subr.mxu0 0.0
    %184 = vmatpush1.msra.mxu0 %v166
    %185 = vmatprep.subr.mxu0 0.0
    %186 = vmatpush1.msra.mxu0 %v167
    %187 = vmatprep.subr.mxu0 0.0
    %188 = vmatpush1.msra.mxu0 %v168
    %189 = vmatprep.subr.mxu0 0.0
    %190 = vmatpush1.msra.mxu0 %v169
    %191 = vmatprep.subr.mxu0 0.0
    %192 = vmatpush1.msra.mxu0 %v170
    %193 = vmatprep.subr.mxu0 0.0
    %194 = vmatpush1.msra.mxu0 %v171
    %195 = vmatprep.subr.mxu0 0.0
    %196 = vmatpush1.msra.mxu0 %v172
    %197 = vmatprep.subr.mxu0 0.0
    %198 = vmatpush1.msra.mxu0 %v173
    %199 = vmatprep.subr.mxu0 0.0
    %200 = vmatpush1.msra.mxu0 %v174
    %201 = vmatprep.subr.mxu0 0.0
    %202 = vmatpush1.msra.mxu0 %v175
    %203 = vmatprep.subr.mxu0 0.0
    %204 = vmatpush1.msra.mxu0 %v176
    %205 = vmatprep.subr.mxu0 0.0
    %206 = vmatpush1.msra.mxu0 %v177
    %207 = vmatprep.subr.mxu0 0.0
    %208 = vmatpush1.msra.mxu0 %v178
    %209 = vmatprep.subr.mxu0 0.0
    %210 = vmatpush1.msra.mxu0 %v179
    %211 = vmatprep.subr.mxu0 0.0
    %212 = vmatpush1.msra.mxu0 %v180
    %213 = vmatprep.subr.mxu0 0.0
    %214 = vmatpush1.msra.mxu0 0.0
    %215 = vmatprep.subr.mxu0 0.0
    %216 = vmatpush1.msra.mxu0 0.0
    %217 = vmatprep.subr.mxu0 0.0
    %218 = vmatpush1.msra.mxu0 0.0
    %219 = vmatprep.subr.mxu0 0.0
    %220 = vmatpush1.msra.mxu0 0.0
    %221 = vmatprep.subr.mxu0 0.0
    %222 = vmatpush1.msra.mxu0 0.0
    %223 = vmatprep.subr.mxu0 0.0
    %224 = vmatpush1.msra.mxu0 0.0
    %225 = vmatprep.subr.mxu0 0.0
    %226 = vmatpush1.msra.mxu0 0.0
    %227 = vmatprep.subr.mxu0 0.0
    %228 = vmatpush1.msra.mxu0 0.0
    %229 = vmatprep.subr.mxu0 0.0
    %230 = vmatpush1.msra.mxu0 0.0
    %231 = vmatprep.subr.mxu0 0.0
    %232 = vmatpush1.msra.mxu0 0.0
    %233 = vmatprep.subr.mxu0 0.0
    %234 = vmatpush1.msra.mxu0 0.0
    %235 = vmatprep.subr.mxu0 0.0
    %236 = vmatpush1.msra.mxu0 0.0
    %237 = vmatprep.subr.mxu0 0.0
    %238 = vmatpush1.msra.mxu0 0.0
    %239 = vmatprep.subr.mxu0 0.0
    %240 = vmatpush1.msra.mxu0 0.0
    %241 = vmatprep.subr.mxu0 0.0
    %242 = vmatpush1.msra.mxu0 0.0
    %243 = vmatprep.subr.mxu0 0.0
    %244 = vmatpush1.msra.mxu0 0.0
    %245 = vmatprep.mubr.f32.mxu0 0.0
    %246 = vmatmul.mubr.f32.gmra.mrb[0].mxu0 %v164
    %v247 = vpop.f32.mrb[0].mxu0
    %v248 = vadd.f32 0.0, %v247
    %v249 = vpop.f32.mrb[0].mxu0
    %250 = vdwg.mxu0
    %v251 = vpack.c.bf16 %v248, %v248
    %v252 = vld [vmem:[#allocation7] sm:$0xf]
    %v253 = vld [vmem:[#allocation7 + $0x4] sm:$0xf]
    %v254 = vld [vmem:[#allocation7 + $0x8] sm:$0xf]
    %v255 = vld [vmem:[#allocation7 + $0xc] sm:$0xf]
    %v256 = vld [vmem:[#allocation7 + $0x10] sm:$0xf]
    %v257 = vld [vmem:[#allocation7 + $0x14] sm:$0xf]
    %v258 = vld [vmem:[#allocation7 + $0x18] sm:$0xf]
    %v259 = vld [vmem:[#allocation7 + $0x1c] sm:$0xf]
    %v260 = vld [vmem:[#allocation7 + $0x20] sm:$0xf]
    %v261 = vld [vmem:[#allocation7 + $0x24] sm:$0xf]
    %v262 = vld [vmem:[#allocation7 + $0x28] sm:$0xf]
    %v263 = vld [vmem:[#allocation7 + $0x2c] sm:$0xf]
    %v264 = vld [vmem:[#allocation7 + $0x30] sm:$0xf]
    %v265 = vld [vmem:[#allocation7 + $0x34] sm:$0xf]
    %v266 = vld [vmem:[#allocation7 + $0x38] sm:$0xf]
    %v267 = vld [vmem:[#allocation7 + $0x3c] sm:$0xf]
    %v268 = vld [vmem:[%s4] sm:$0x1]
    %v270 = vlaneseq
    %v271 = vshrl.u32 %v270, 7
    %v272 = vsub.s32 0, %v271
    %v273 = vrot.slane %v268, %v272
    %v291 = vunpack.c.l.b16 %v252
    %v292 = vunpack.c.l.b16 %v253
    %v293 = vunpack.c.l.b16 %v254
    %v294 = vunpack.c.l.b16 %v255
    %v295 = vunpack.c.l.b16 %v256
    %v296 = vunpack.c.l.b16 %v257
    %v297 = vunpack.c.l.b16 %v258
    %v298 = vunpack.c.l.b16 %v259
    %v299 = vunpack.c.l.b16 %v260
    %v300 = vunpack.c.l.b16 %v261
    %v301 = vunpack.c.l.b16 %v262
    %v302 = vunpack.c.l.b16 %v263
    %v303 = vunpack.c.l.b16 %v264
    %v304 = vunpack.c.l.b16 %v265
    %v305 = vunpack.c.l.b16 %v266
    %v306 = vunpack.c.l.b16 %v267
    %v307 = vpack.c.b16 %v292, %v291
    %v308 = vpack.c.b16 %v294, %v293
    %v309 = vpack.c.b16 %v296, %v295
    %v310 = vpack.c.b16 %v298, %v297
    %v311 = vpack.c.b16 %v300, %v299
    %v312 = vpack.c.b16 %v302, %v301
    %v313 = vpack.c.b16 %v304, %v303
    %v314 = vpack.c.b16 %v306, %v305
    %323 = vmatprep.subr.bf16.mxu0 0
    %324 = vmatpush1.bf16.msra.mxu0 %v307
    %325 = vmatprep.subr.bf16.mxu0 0
    %326 = vmatpush1.bf16.msra.mxu0 %v308
    %327 = vmatprep.subr.bf16.mxu0 0
    %328 = vmatpush1.bf16.msra.mxu0 %v309
    %329 = vmatprep.subr.bf16.mxu0 0
    %330 = vmatpush1.bf16.msra.mxu0 %v310
    %331 = vmatprep.subr.bf16.mxu0 0
    %332 = vmatpush1.bf16.msra.mxu0 %v311
    %333 = vmatprep.subr.bf16.mxu0 0
    %334 = vmatpush1.bf16.msra.mxu0 %v312
    %335 = vmatprep.subr.bf16.mxu0 0
    %336 = vmatpush1.bf16.msra.mxu0 %v313
    %337 = vmatprep.subr.bf16.mxu0 0
    %338 = vmatpush1.bf16.msra.mxu0 %v314
    %339 = vmatprep.subr.bf16.mxu0 0
    %340 = vmatpush1.bf16.msra.mxu0 0
    %341 = vmatprep.subr.bf16.mxu0 0
    %342 = vmatpush1.bf16.msra.mxu0 0
    %343 = vmatprep.subr.bf16.mxu0 0
    %344 = vmatpush1.bf16.msra.mxu0 0
    %345 = vmatprep.subr.bf16.mxu0 0
    %346 = vmatpush1.bf16.msra.mxu0 0
    %347 = vmatprep.subr.bf16.mxu0 0
    %348 = vmatpush1.bf16.msra.mxu0 0
    %349 = vmatprep.subr.bf16.mxu0 0
    %350 = vmatpush1.bf16.msra.mxu0 0
    %351 = vmatprep.subr.bf16.mxu0 0
    %352 = vmatpush1.bf16.msra.mxu0 0
    %353 = vmatprep.subr.bf16.mxu0 0
    %354 = vmatpush1.bf16.msra.mxu0 0
    %355 = vmatprep.mubr.bf16.mxu0 0
    %356 = vmatmul.mubr.bf16.gmra.mrb[0].mxu0 %v251
    %v357 = vpop.f32.mrb[0].mxu0
    %v358 = vadd.f32 %v273, %v357
    %v359 = vpop.f32.mrb[0].mxu0
    %v360 = vpop.f32.mrb[0].mxu0
    %v361 = vpop.f32.mrb[0].mxu0
    %362 = vdwg.mxu0
    %v363 = vsub.f32 0.0, %v358
    %v364 = vmul.f32 %v363, 1.442695
    %v365 = vpow.pop %v364
    %v366 = vadd.f32 %v365, 1.0
    %v367 = vrcp.pop %v366
    %v368 = vmul.f32 %v358, %v367
    %v369 = vpack.c.bf16 %v368, %v368
    %v370 = vld [vmem:[#allocation8] sm:$0xf]
    %v371 = vld [vmem:[#allocation8 + $0x4] sm:$0xf]
    %v372 = vld [vmem:[#allocation8 + $0x8] sm:$0xf]
    %v373 = vld [vmem:[#allocation8 + $0xc] sm:$0xf]
    %v374 = vld [vmem:[#allocation8 + $0x10] sm:$0xf]
    %v375 = vld [vmem:[#allocation8 + $0x14] sm:$0xf]
    %v376 = vld [vmem:[#allocation8 + $0x18] sm:$0xf]
    %v377 = vld [vmem:[#allocation8 + $0x1c] sm:$0xf]
    %v378 = vld [vmem:[#allocation8 + $0x20] sm:$0xf]
    %v379 = vld [vmem:[#allocation8 + $0x24] sm:$0xf]
    %v380 = vld [vmem:[#allocation8 + $0x28] sm:$0xf]
    %v381 = vld [vmem:[#allocation8 + $0x2c] sm:$0xf]
    %v382 = vld [vmem:[#allocation8 + $0x30] sm:$0xf]
    %v383 = vld [vmem:[#allocation8 + $0x34] sm:$0xf]
    %v384 = vld [vmem:[#allocation8 + $0x38] sm:$0xf]
    %v385 = vld [vmem:[#allocation8 + $0x3c] sm:$0xf]
    %v386 = vld [vmem:[%s6] sm:$0x1]
    %v388 = vlaneseq
    %v389 = vshrl.u32 %v388, 7
    %v390 = vsub.s32 0, %v389
    %v391 = vrot.slane %v386, %v390
    %v409 = vunpack.c.l.b16 %v370
    %v410 = vunpack.c.l.b16 %v371
    %v411 = vunpack.c.l.b16 %v372
    %v412 = vunpack.c.l.b16 %v373
    %v413 = vunpack.c.l.b16 %v374
    %v414 = vunpack.c.l.b16 %v375
    %v415 = vunpack.c.l.b16 %v376
    %v416 = vunpack.c.l.b16 %v377
    %v417 = vunpack.c.l.b16 %v378
    %v418 = vunpack.c.l.b16 %v379
    %v419 = vunpack.c.l.b16 %v380
    %v420 = vunpack.c.l.b16 %v381
    %v421 = vunpack.c.l.b16 %v382
    %v422 = vunpack.c.l.b16 %v383
    %v423 = vunpack.c.l.b16 %v384
    %v424 = vunpack.c.l.b16 %v385
    %v425 = vpack.c.b16 %v410, %v409
    %v426 = vpack.c.b16 %v412, %v411
    %v427 = vpack.c.b16 %v414, %v413
    %v428 = vpack.c.b16 %v416, %v415
    %v429 = vpack.c.b16 %v418, %v417
    %v430 = vpack.c.b16 %v420, %v419
    %v431 = vpack.c.b16 %v422, %v421
    %v432 = vpack.c.b16 %v424, %v423
    %441 = vmatprep.subr.bf16.mxu0 0
    %442 = vmatpush1.bf16.msra.mxu0 %v425
    %443 = vmatprep.subr.bf16.mxu0 0
    %444 = vmatpush1.bf16.msra.mxu0 %v426
    %445 = vmatprep.subr.bf16.mxu0 0
    %446 = vmatpush1.bf16.msra.mxu0 %v427
    %447 = vmatprep.subr.bf16.mxu0 0
    %448 = vmatpush1.bf16.msra.mxu0 %v428
    %449 = vmatprep.subr.bf16.mxu0 0
    %450 = vmatpush1.bf16.msra.mxu0 %v429
    %451 = vmatprep.subr.bf16.mxu0 0
    %452 = vmatpush1.bf16.msra.mxu0 %v430
    %453 = vmatprep.subr.bf16.mxu0 0
    %454 = vmatpush1.bf16.msra.mxu0 %v431
    %455 = vmatprep.subr.bf16.mxu0 0
    %456 = vmatpush1.bf16.msra.mxu0 %v432
    %457 = vmatprep.subr.bf16.mxu0 0
    %458 = vmatpush1.bf16.msra.mxu0 0
    %459 = vmatprep.subr.bf16.mxu0 0
    %460 = vmatpush1.bf16.msra.mxu0 0
    %461 = vmatprep.subr.bf16.mxu0 0
    %462 = vmatpush1.bf16.msra.mxu0 0
    %463 = vmatprep.subr.bf16.mxu0 0
    %464 = vmatpush1.bf16.msra.mxu0 0
    %465 = vmatprep.subr.bf16.mxu0 0
    %466 = vmatpush1.bf16.msra.mxu0 0
    %467 = vmatprep.subr.bf16.mxu0 0
    %468 = vmatpush1.bf16.msra.mxu0 0
    %469 = vmatprep.subr.bf16.mxu0 0
    %470 = vmatpush1.bf16.msra.mxu0 0
    %471 = vmatprep.subr.bf16.mxu0 0
    %472 = vmatpush1.bf16.msra.mxu0 0
    %473 = vmatprep.mubr.bf16.mxu0 0
    %474 = vmatmul.mubr.bf16.gmra.mrb[0].mxu0 %v369
    %v475 = vpop.f32.mrb[0].mxu0
    %v476 = vadd.f32 %v391, %v475
    %v477 = vpop.f32.mrb[0].mxu0
    %v478 = vpop.f32.mrb[0].mxu0
    %v479 = vpop.f32.mrb[0].mxu0
    %480 = vdwg.mxu0
    %v481 = vpack.c.bf16 %v476, %v476
    %v482 = vld [vmem:[#allocation10] sm:$0xf]
    %v483 = vld [vmem:[#allocation10 + $0x4] sm:$0xf]
    %v484 = vld [vmem:[#allocation10 + $0x8] sm:$0xf]
    %v485 = vld [vmem:[#allocation10 + $0xc] sm:$0xf]
    %v486 = vld [vmem:[#allocation10 + $0x10] sm:$0xf]
    %v487 = vld [vmem:[#allocation10 + $0x14] sm:$0xf]
    %v488 = vld [vmem:[#allocation10 + $0x18] sm:$0xf]
    %v489 = vld [vmem:[#allocation10 + $0x1c] sm:$0xf]
    %v490 = vld [vmem:[#allocation10 + $0x20] sm:$0xf]
    %v491 = vld [vmem:[#allocation10 + $0x24] sm:$0xf]
    %v492 = vld [vmem:[#allocation10 + $0x28] sm:$0xf]
    %v493 = vld [vmem:[#allocation10 + $0x2c] sm:$0xf]
    %v494 = vld [vmem:[#allocation10 + $0x30] sm:$0xf]
    %v495 = vld [vmem:[#allocation10 + $0x34] sm:$0xf]
    %v496 = vld [vmem:[#allocation10 + $0x38] sm:$0xf]
    %v497 = vld [vmem:[#allocation10 + $0x3c] sm:$0xf]
    %v498 = vld [vmem:[#allocation2] sm:$0xff]
    %v499 = vld [vmem:[#allocation2 + $0x8] sm:$0xff]
    %v500 = vld [vmem:[#allocation2 + $0x10] sm:$0xff]
    %v501 = vpack.c.bf16 %v498, %v498
    %v502 = vpack.c.bf16 %v499, %v499
    %v503 = vpack.c.bf16 %v500, %v500
    %v504 = vld [vmem:[#allocation11] sm:$0xf]
    %v505 = vld [vmem:[#allocation11 + $0x4] sm:$0xf]
    %v506 = vld [vmem:[#allocation11 + $0x8] sm:$0xf]
    %v507 = vld [vmem:[#allocation11 + $0xc] sm:$0xf]
    %v508 = vld [vmem:[#allocation11 + $0x10] sm:$0xf]
    %v509 = vld [vmem:[#allocation11 + $0x14] sm:$0xf]
    %v510 = vld [vmem:[#allocation11 + $0x18] sm:$0xf]
    %v511 = vld [vmem:[#allocation11 + $0x1c] sm:$0xf]
    %v512 = vld [vmem:[#allocation11 + $0x20] sm:$0xf]
    %v513 = vld [vmem:[#allocation11 + $0x24] sm:$0xf]
    %v514 = vld [vmem:[#allocation11 + $0x28] sm:$0xf]
    %v515 = vld [vmem:[#allocation11 + $0x2c] sm:$0xf]
    %v516 = vld [vmem:[#allocation11 + $0x30] sm:$0xf]
    %v517 = vld [vmem:[#allocation11 + $0x34] sm:$0xf]
    %v518 = vld [vmem:[#allocation11 + $0x38] sm:$0xf]
    %v519 = vld [vmem:[#allocation11 + $0x3c] sm:$0xf]
    %v520 = vld [vmem:[#allocation11 + $0x40] sm:$0xf]
    %v521 = vld [vmem:[#allocation11 + $0x44] sm:$0xf]
    %v522 = vld [vmem:[#allocation11 + $0x48] sm:$0xf]
    %v523 = vld [vmem:[#allocation11 + $0x4c] sm:$0xf]
    %v524 = vld [vmem:[#allocation11 + $0x50] sm:$0xf]
    %v525 = vld [vmem:[#allocation11 + $0x54] sm:$0xf]
    %v526 = vld [vmem:[#allocation11 + $0x58] sm:$0xf]
    %v527 = vld [vmem:[#allocation11 + $0x5c] sm:$0xf]
    %v528 = vld [vmem:[#allocation11 + $0x60] sm:$0xf]
    %v529 = vld [vmem:[#allocation11 + $0x64] sm:$0xf]
    %v530 = vld [vmem:[#allocation11 + $0x68] sm:$0xf]
    %v531 = vld [vmem:[#allocation11 + $0x6c] sm:$0xf]
    %v532 = vld [vmem:[#allocation11 + $0x70] sm:$0xf]
    %v533 = vld [vmem:[#allocation11 + $0x74] sm:$0xf]
    %v534 = vld [vmem:[#allocation11 + $0x78] sm:$0xf]
    %v535 = vld [vmem:[#allocation11 + $0x7c] sm:$0xf]
    %v536 = vld [vmem:[#allocation11 + $0x80] sm:$0xf]
    %v537 = vld [vmem:[#allocation11 + $0x84] sm:$0xf]
    %v538 = vld [vmem:[#allocation11 + $0x88] sm:$0xf]
    %v539 = vld [vmem:[#allocation11 + $0x8c] sm:$0xf]
    %v540 = vld [vmem:[#allocation11 + $0x90] sm:$0xf]
    %v541 = vld [vmem:[#allocation11 + $0x94] sm:$0xf]
    %v542 = vld [vmem:[#allocation11 + $0x98] sm:$0xf]
    %v543 = vld [vmem:[#allocation11 + $0x9c] sm:$0xf]
    %v544 = vld [vmem:[#allocation11 + $0xa0] sm:$0xf]
    %v545 = vld [vmem:[#allocation11 + $0xa4] sm:$0xf]
    %v546 = vld [vmem:[#allocation11 + $0xa8] sm:$0xf]
    %v547 = vld [vmem:[#allocation11 + $0xac] sm:$0xf]
    %v548 = vld [vmem:[#allocation11 + $0xb0] sm:$0xf]
    %v549 = vld [vmem:[#allocation11 + $0xb4] sm:$0xf]
    %v550 = vld [vmem:[#allocation11 + $0xb8] sm:$0xf]
    %v551 = vld [vmem:[#allocation11 + $0xbc] sm:$0xf]
    %v600 = vunpack.c.l.b16 %v504
    %v601 = vunpack.c.l.b16 %v505
    %v602 = vunpack.c.l.b16 %v506
    %v603 = vunpack.c.l.b16 %v507
    %v604 = vunpack.c.l.b16 %v508
    %v605 = vunpack.c.l.b16 %v509
    %v606 = vunpack.c.l.b16 %v510
    %v607 = vunpack.c.l.b16 %v511
    %v608 = vunpack.c.l.b16 %v512
    %v609 = vunpack.c.l.b16 %v513
    %v610 = vunpack.c.l.b16 %v514
    %v611 = vunpack.c.l.b16 %v515
    %v612 = vunpack.c.l.b16 %v516
    %v613 = vunpack.c.l.b16 %v517
    %v614 = vunpack.c.l.b16 %v518
    %v615 = vunpack.c.l.b16 %v519
    %v616 = vunpack.c.l.b16 %v520
    %v617 = vunpack.c.l.b16 %v521
    %v618 = vunpack.c.l.b16 %v522
    %v619 = vunpack.c.l.b16 %v523
    %v620 = vunpack.c.l.b16 %v524
    %v621 = vunpack.c.l.b16 %v525
    %v622 = vunpack.c.l.b16 %v526
    %v623 = vunpack.c.l.b16 %v527
    %v624 = vunpack.c.l.b16 %v528
    %v625 = vunpack.c.l.b16 %v529
    %v626 = vunpack.c.l.b16 %v530
    %v627 = vunpack.c.l.b16 %v531
    %v628 = vunpack.c.l.b16 %v532
    %v629 = vunpack.c.l.b16 %v533
    %v630 = vunpack.c.l.b16 %v534
    %v631 = vunpack.c.l.b16 %v535
    %v632 = vunpack.c.l.b16 %v536
    %v633 = vunpack.c.l.b16 %v537
    %v634 = vunpack.c.l.b16 %v538
    %v635 = vunpack.c.l.b16 %v539
    %v636 = vunpack.c.l.b16 %v540
    %v637 = vunpack.c.l.b16 %v541
    %v638 = vunpack.c.l.b16 %v542
    %v639 = vunpack.c.l.b16 %v543
    %v640 = vunpack.c.l.b16 %v544
    %v641 = vunpack.c.l.b16 %v545
    %v642 = vunpack.c.l.b16 %v546
    %v643 = vunpack.c.l.b16 %v547
    %v644 = vunpack.c.l.b16 %v548
    %v645 = vunpack.c.l.b16 %v549
    %v646 = vunpack.c.l.b16 %v550
    %v647 = vunpack.c.l.b16 %v551
    %v648 = vpack.c.b16 %v601, %v600
    %v649 = vpack.c.b16 %v603, %v602
    %v650 = vpack.c.b16 %v605, %v604
    %v651 = vpack.c.b16 %v607, %v606
    %v652 = vpack.c.b16 %v609, %v608
    %v653 = vpack.c.b16 %v611, %v610
    %v654 = vpack.c.b16 %v613, %v612
    %v655 = vpack.c.b16 %v615, %v614
    %v656 = vpack.c.b16 %v617, %v616
    %v657 = vpack.c.b16 %v619, %v618
    %v658 = vpack.c.b16 %v621, %v620
    %v659 = vpack.c.b16 %v623, %v622
    %v660 = vpack.c.b16 %v625, %v624
    %v661 = vpack.c.b16 %v627, %v626
    %v662 = vpack.c.b16 %v629, %v628
    %v663 = vpack.c.b16 %v631, %v630
    %v664 = vpack.c.b16 %v633, %v632
    %v665 = vpack.c.b16 %v635, %v634
    %v666 = vpack.c.b16 %v637, %v636
    %v667 = vpack.c.b16 %v639, %v638
    %v668 = vpack.c.b16 %v641, %v640
    %v669 = vpack.c.b16 %v643, %v642
    %v670 = vpack.c.b16 %v645, %v644
    %v671 = vpack.c.b16 %v647, %v646
    %696 = vmatprep.subr.bf16.mxu0 0
    %697 = vmatpush1.bf16.msra.mxu0 %v648
    %698 = vmatprep.subr.bf16.mxu0 0
    %699 = vmatpush1.bf16.msra.mxu0 %v649
    %700 = vmatprep.subr.bf16.mxu0 0
    %701 = vmatpush1.bf16.msra.mxu0 %v650
    %702 = vmatprep.subr.bf16.mxu0 0
    %703 = vmatpush1.bf16.msra.mxu0 %v651
    %704 = vmatprep.subr.bf16.mxu0 0
    %705 = vmatpush1.bf16.msra.mxu0 %v652
    %706 = vmatprep.subr.bf16.mxu0 0
    %707 = vmatpush1.bf16.msra.mxu0 %v653
    %708 = vmatprep.subr.bf16.mxu0 0
    %709 = vmatpush1.bf16.msra.mxu0 %v654
    %710 = vmatprep.subr.bf16.mxu0 0
    %711 = vmatpush1.bf16.msra.mxu0 %v655
    %712 = vmatprep.subr.bf16.mxu0 0
    %713 = vmatpush1.bf16.msra.mxu0 %v656
    %714 = vmatprep.subr.bf16.mxu0 0
    %715 = vmatpush1.bf16.msra.mxu0 %v657
    %716 = vmatprep.subr.bf16.mxu0 0
    %717 = vmatpush1.bf16.msra.mxu0 %v658
    %718 = vmatprep.subr.bf16.mxu0 0
    %719 = vmatpush1.bf16.msra.mxu0 %v659
    %720 = vmatprep.subr.bf16.mxu0 0
    %721 = vmatpush1.bf16.msra.mxu0 %v660
    %722 = vmatprep.subr.bf16.mxu0 0
    %723 = vmatpush1.bf16.msra.mxu0 %v661
    %724 = vmatprep.subr.bf16.mxu0 0
    %725 = vmatpush1.bf16.msra.mxu0 %v662
    %726 = vmatprep.subr.bf16.mxu0 0
    %727 = vmatpush1.bf16.msra.mxu0 %v663
    %728 = vmatprep.mubr.bf16.mxu0 %v502
    %729 = vmatmul.mubr.bf16.gmra.mrb[0].mxu0 %v501
    %v730 = vpop.f32.mrb[0].mxu0
    %v731 = vadd.f32 0.0, %v730
    %v732 = vpop.f32.mrb[0].mxu0
    %v733 = vpop.f32.mrb[0].mxu0
    %v734 = vpop.f32.mrb[0].mxu0
    %735 = vdwg.mxu0
    %736 = vmatprep.subr.bf16.mxu0 0
    %737 = vmatpush1.bf16.msra.mxu0 %v664
    %738 = vmatprep.subr.bf16.mxu0 0
    %739 = vmatpush1.bf16.msra.mxu0 %v665
    %740 = vmatprep.subr.bf16.mxu0 0
    %741 = vmatpush1.bf16.msra.mxu0 %v666
    %742 = vmatprep.subr.bf16.mxu0 0
    %743 = vmatpush1.bf16.msra.mxu0 %v667
    %744 = vmatprep.subr.bf16.mxu0 0
    %745 = vmatpush1.bf16.msra.mxu0 %v668
    %746 = vmatprep.subr.bf16.mxu0 0
    %747 = vmatpush1.bf16.msra.mxu0 %v669
    %748 = vmatprep.subr.bf16.mxu0 0
    %749 = vmatpush1.bf16.msra.mxu0 %v670
    %750 = vmatprep.subr.bf16.mxu0 0
    %751 = vmatpush1.bf16.msra.mxu0 %v671
    %752 = vmatprep.subr.bf16.mxu0 0
    %753 = vmatpush1.bf16.msra.mxu0 0
    %754 = vmatprep.subr.bf16.mxu0 0
    %755 = vmatpush1.bf16.msra.mxu0 0
    %756 = vmatprep.subr.bf16.mxu0 0
    %757 = vmatpush1.bf16.msra.mxu0 0
    %758 = vmatprep.subr.bf16.mxu0 0
    %759 = vmatpush1.bf16.msra.mxu0 0
    %760 = vmatprep.subr.bf16.mxu0 0
    %761 = vmatpush1.bf16.msra.mxu0 0
    %762 = vmatprep.subr.bf16.mxu0 0
    %763 = vmatpush1.bf16.msra.mxu0 0
    %764 = vmatprep.subr.bf16.mxu0 0
    %765 = vmatpush1.bf16.msra.mxu0 0
    %766 = vmatprep.subr.bf16.mxu0 0
    %767 = vmatpush1.bf16.msra.mxu0 0
    %768 = vmatprep.mubr.bf16.mxu0 0
    %769 = vmatmul.mubr.bf16.gmra.mrb[0].mxu0 %v503
    %v770 = vpop.f32.mrb[0].mxu0
    %v771 = vadd.f32 %v731, %v770
    %v772 = vpop.f32.mrb[0].mxu0
    %v773 = vpop.f32.mrb[0].mxu0
    %v774 = vpop.f32.mrb[0].mxu0
    %775 = vdwg.mxu0
    %v792 = vunpack.c.l.b16 %v482
    %v793 = vunpack.c.l.b16 %v483
    %v794 = vunpack.c.l.b16 %v484
    %v795 = vunpack.c.l.b16 %v485
    %v796 = vunpack.c.l.b16 %v486
    %v797 = vunpack.c.l.b16 %v487
    %v798 = vunpack.c.l.b16 %v488
    %v799 = vunpack.c.l.b16 %v489
    %v800 = vunpack.c.l.b16 %v490
    %v801 = vunpack.c.l.b16 %v491
    %v802 = vunpack.c.l.b16 %v492
    %v803 = vunpack.c.l.b16 %v493
    %v804 = vunpack.c.l.b16 %v494
    %v805 = vunpack.c.l.b16 %v495
    %v806 = vunpack.c.l.b16 %v496
    %v807 = vunpack.c.l.b16 %v497
    %v808 = vpack.c.b16 %v793, %v792
    %v809 = vpack.c.b16 %v795, %v794
    %v810 = vpack.c.b16 %v797, %v796
    %v811 = vpack.c.b16 %v799, %v798
    %v812 = vpack.c.b16 %v801, %v800
    %v813 = vpack.c.b16 %v803, %v802
    %v814 = vpack.c.b16 %v805, %v804
    %v815 = vpack.c.b16 %v807, %v806
    %824 = vmatprep.subr.bf16.mxu0 0
    %825 = vmatpush1.bf16.msra.mxu0 %v808
    %826 = vmatprep.subr.bf16.mxu0 0
    %827 = vmatpush1.bf16.msra.mxu0 %v809
    %828 = vmatprep.subr.bf16.mxu0 0
    %829 = vmatpush1.bf16.msra.mxu0 %v810
    %830 = vmatprep.subr.bf16.mxu0 0
    %831 = vmatpush1.bf16.msra.mxu0 %v811
    %832 = vmatprep.subr.bf16.mxu0 0
    %833 = vmatpush1.bf16.msra.mxu0 %v812
    %834 = vmatprep.subr.bf16.mxu0 0
    %835 = vmatpush1.bf16.msra.mxu0 %v813
    %836 = vmatprep.subr.bf16.mxu0 0
    %837 = vmatpush1.bf16.msra.mxu0 %v814
    %838 = vmatprep.subr.bf16.mxu0 0
    %839 = vmatpush1.bf16.msra.mxu0 %v815
    %840 = vmatprep.subr.bf16.mxu0 0
    %841 = vmatpush1.bf16.msra.mxu0 0
    %842 = vmatprep.subr.bf16.mxu0 0
    %843 = vmatpush1.bf16.msra.mxu0 0
    %844 = vmatprep.subr.bf16.mxu0 0
    %845 = vmatpush1.bf16.msra.mxu0 0
    %846 = vmatprep.subr.bf16.mxu0 0
    %847 = vmatpush1.bf16.msra.mxu0 0
    %848 = vmatprep.subr.bf16.mxu0 0
    %849 = vmatpush1.bf16.msra.mxu0 0
    %850 = vmatprep.subr.bf16.mxu0 0
    %851 = vmatpush1.bf16.msra.mxu0 0
    %852 = vmatprep.subr.bf16.mxu0 0
    %853 = vmatpush1.bf16.msra.mxu0 0
    %854 = vmatprep.subr.bf16.mxu0 0
    %855 = vmatpush1.bf16.msra.mxu0 0
    %856 = vmatprep.mubr.bf16.mxu0 0
    %857 = vmatmul.mubr.bf16.gmra.mrb[0].mxu0 %v481
    %v858 = vpop.f32.mrb[0].mxu0
    %v859 = vadd.f32 %v771, %v858
    %v860 = vpop.f32.mrb[0].mxu0
    %v861 = vpop.f32.mrb[0].mxu0
    %v862 = vpop.f32.mrb[0].mxu0
    %863 = vdwg.mxu0
    %v864 = vld [vmem:[%s9] sm:$0x1]
    %v866 = vlaneseq
    %v867 = vshrl.u32 %v866, 7
    %v868 = vsub.s32 0, %v867
    %v869 = vrot.slane %v864, %v868
    %v871 = vadd.f32 %v859, %v869
    %v872 = vpack.c.bf16 %v871, %v871
    %v873 = vld [vmem:[#allocation13] sm:$0xf]
    %v874 = vld [vmem:[#allocation13 + $0x4] sm:$0xf]
    %v875 = vld [vmem:[#allocation13 + $0x8] sm:$0xf]
    %v876 = vld [vmem:[#allocation13 + $0xc] sm:$0xf]
    %v877 = vld [vmem:[#allocation13 + $0x10] sm:$0xf]
    %v878 = vld [vmem:[#allocation13 + $0x14] sm:$0xf]
    %v879 = vld [vmem:[#allocation13 + $0x18] sm:$0xf]
    %v880 = vld [vmem:[#allocation13 + $0x1c] sm:$0xf]
    %v881 = vld [vmem:[#allocation13 + $0x20] sm:$0xf]
    %v882 = vld [vmem:[#allocation13 + $0x24] sm:$0xf]
    %v883 = vld [vmem:[#allocation13 + $0x28] sm:$0xf]
    %v884 = vld [vmem:[#allocation13 + $0x2c] sm:$0xf]
    %v885 = vld [vmem:[#allocation13 + $0x30] sm:$0xf]
    %v886 = vld [vmem:[#allocation13 + $0x34] sm:$0xf]
    %v887 = vld [vmem:[#allocation13 + $0x38] sm:$0xf]
    %v888 = vld [vmem:[#allocation13 + $0x3c] sm:$0xf]
    %v889 = vld [vmem:[%s11] sm:$0x1]
    %v891 = vlaneseq
    %v892 = vshrl.u32 %v891, 7
    %v893 = vsub.s32 0, %v892
    %v894 = vrot.slane %v889, %v893
    %v912 = vunpack.c.l.b16 %v873
    %v913 = vunpack.c.l.b16 %v874
    %v914 = vunpack.c.l.b16 %v875
    %v915 = vunpack.c.l.b16 %v876
    %v916 = vunpack.c.l.b16 %v877
    %v917 = vunpack.c.l.b16 %v878
    %v918 = vunpack.c.l.b16 %v879
    %v919 = vunpack.c.l.b16 %v880
    %v920 = vunpack.c.l.b16 %v881
    %v921 = vunpack.c.l.b16 %v882
    %v922 = vunpack.c.l.b16 %v883
    %v923 = vunpack.c.l.b16 %v884
    %v924 = vunpack.c.l.b16 %v885
    %v925 = vunpack.c.l.b16 %v886
    %v926 = vunpack.c.l.b16 %v887
    %v927 = vunpack.c.l.b16 %v888
    %v928 = vpack.c.b16 %v913, %v912
    %v929 = vpack.c.b16 %v915, %v914
    %v930 = vpack.c.b16 %v917, %v916
    %v931 = vpack.c.b16 %v919, %v918
    %v932 = vpack.c.b16 %v921, %v920
    %v933 = vpack.c.b16 %v923, %v922
    %v934 = vpack.c.b16 %v925, %v924
    %v935 = vpack.c.b16 %v927, %v926
    %944 = vmatprep.subr.bf16.mxu0 0
    %945 = vmatpush1.bf16.msra.mxu0 %v928
    %946 = vmatprep.subr.bf16.mxu0 0
    %947 = vmatpush1.bf16.msra.mxu0 %v929
    %948 = vmatprep.subr.bf16.mxu0 0
    %949 = vmatpush1.bf16.msra.mxu0 %v930
    %950 = vmatprep.subr.bf16.mxu0 0
    %951 = vmatpush1.bf16.msra.mxu0 %v931
    %952 = vmatprep.subr.bf16.mxu0 0
    %953 = vmatpush1.bf16.msra.mxu0 %v932
    %954 = vmatprep.subr.bf16.mxu0 0
    %955 = vmatpush1.bf16.msra.mxu0 %v933
    %956 = vmatprep.subr.bf16.mxu0 0
    %957 = vmatpush1.bf16.msra.mxu0 %v934
    %958 = vmatprep.subr.bf16.mxu0 0
    %959 = vmatpush1.bf16.msra.mxu0 %v935
    %960 = vmatprep.subr.bf16.mxu0 0
    %961 = vmatpush1.bf16.msra.mxu0 0
    %962 = vmatprep.subr.bf16.mxu0 0
    %963 = vmatpush1.bf16.msra.mxu0 0
    %964 = vmatprep.subr.bf16.mxu0 0
    %965 = vmatpush1.bf16.msra.mxu0 0
    %966 = vmatprep.subr.bf16.mxu0 0
    %967 = vmatpush1.bf16.msra.mxu0 0
    %968 = vmatprep.subr.bf16.mxu0 0
    %969 = vmatpush1.bf16.msra.mxu0 0
    %970 = vmatprep.subr.bf16.mxu0 0
    %971 = vmatpush1.bf16.msra.mxu0 0
    %972 = vmatprep.subr.bf16.mxu0 0
    %973 = vmatpush1.bf16.msra.mxu0 0
    %974 = vmatprep.subr.bf16.mxu0 0
    %975 = vmatpush1.bf16.msra.mxu0 0
    %976 = vmatprep.mubr.bf16.mxu0 0
    %977 = vmatmul.mubr.bf16.gmra.mrb[0].mxu0 %v872
    %v978 = vpop.f32.mrb[0].mxu0
    %v979 = vadd.f32 %v894, %v978
    %v980 = vpop.f32.mrb[0].mxu0
    %v981 = vpop.f32.mrb[0].mxu0
    %v982 = vpop.f32.mrb[0].mxu0
    %983 = vdwg.mxu0
    %v984 = vmul.f32 %v979, 0.5
    %v985 = vmul.f32 %v979, 0.044715
    %v986 = vmul.f32 %v985, %v979
    %v987 = vmul.f32 %v986, %v979
    %v988 = vadd.f32 %v979, %v987
    %v989 = vmul.f32 %v988, 0.7978846
    %v990 = vtanh.pop %v989
    %v991 = vadd.f32 %v990, 1.0
    %v992 = vmul.f32 %v984, %v991
    %v993 = vpack.c.bf16 %v992, %v992
    %s994 = scalar_lea.vmem [#allocation13], 64
    %v995 = vld [vmem:[%s994] sm:$0xf]
    %v996 = vld [vmem:[%s994 + $0x4] sm:$0xf]
    %v997 = vld [vmem:[%s994 + $0x8] sm:$0xf]
    %v998 = vld [vmem:[%s994 + $0xc] sm:$0xf]
    %v999 = vld [vmem:[%s994 + $0x10] sm:$0xf]
    %v1000 = vld [vmem:[%s994 + $0x14] sm:$0xf]
    %v1001 = vld [vmem:[%s994 + $0x18] sm:$0xf]
    %v1002 = vld [vmem:[%s994 + $0x1c] sm:$0xf]
    %v1003 = vld [vmem:[%s994 + $0x20] sm:$0xf]
    %v1004 = vld [vmem:[%s994 + $0x24] sm:$0xf]
    %v1005 = vld [vmem:[%s994 + $0x28] sm:$0xf]
    %v1006 = vld [vmem:[%s994 + $0x2c] sm:$0xf]
    %v1007 = vld [vmem:[%s994 + $0x30] sm:$0xf]
    %v1008 = vld [vmem:[%s994 + $0x34] sm:$0xf]
    %v1009 = vld [vmem:[%s994 + $0x38] sm:$0xf]
    %v1010 = vld [vmem:[%s994 + $0x3c] sm:$0xf]
    %s1011 = scalar_lea.vmem %s11, 1
    %v1012 = vld [vmem:[%s1011] sm:$0x1]
    %v1014 = vlaneseq
    %v1015 = vshrl.u32 %v1014, 7
    %v1016 = vsub.s32 0, %v1015
    %v1017 = vrot.slane %v1012, %v1016
    %v1035 = vunpack.c.l.b16 %v995
    %v1036 = vunpack.c.l.b16 %v996
    %v1037 = vunpack.c.l.b16 %v997
    %v1038 = vunpack.c.l.b16 %v998
    %v1039 = vunpack.c.l.b16 %v999
    %v1040 = vunpack.c.l.b16 %v1000
    %v1041 = vunpack.c.l.b16 %v1001
    %v1042 = vunpack.c.l.b16 %v1002
    %v1043 = vunpack.c.l.b16 %v1003
    %v1044 = vunpack.c.l.b16 %v1004
    %v1045 = vunpack.c.l.b16 %v1005
    %v1046 = vunpack.c.l.b16 %v1006
    %v1047 = vunpack.c.l.b16 %v1007
    %v1048 = vunpack.c.l.b16 %v1008
    %v1049 = vunpack.c.l.b16 %v1009
    %v1050 = vunpack.c.l.b16 %v1010
    %v1051 = vpack.c.b16 %v1036, %v1035
    %v1052 = vpack.c.b16 %v1038, %v1037
    %v1053 = vpack.c.b16 %v1040, %v1039
    %v1054 = vpack.c.b16 %v1042, %v1041
    %v1055 = vpack.c.b16 %v1044, %v1043
    %v1056 = vpack.c.b16 %v1046, %v1045
    %v1057 = vpack.c.b16 %v1048, %v1047
    %v1058 = vpack.c.b16 %v1050, %v1049
    %1067 = vmatprep.subr.bf16.mxu0 0
    %1068 = vmatpush1.bf16.msra.mxu0 %v1051
    %1069 = vmatprep.subr.bf16.mxu0 0
    %1070 = vmatpush1.bf16.msra.mxu0 %v1052
    %1071 = vmatprep.subr.bf16.mxu0 0
    %1072 = vmatpush1.bf16.msra.mxu0 %v1053
    %1073 = vmatprep.subr.bf16.mxu0 0
    %1074 = vmatpush1.bf16.msra.mxu0 %v1054
    %1075 = vmatprep.subr.bf16.mxu0 0
    %1076 = vmatpush1.bf16.msra.mxu0 %v1055
    %1077 = vmatprep.subr.bf16.mxu0 0
    %1078 = vmatpush1.bf16.msra.mxu0 %v1056
    %1079 = vmatprep.subr.bf16.mxu0 0
    %1080 = vmatpush1.bf16.msra.mxu0 %v1057
    %1081 = vmatprep.subr.bf16.mxu0 0
    %1082 = vmatpush1.bf16.msra.mxu0 %v1058
    %1083 = vmatprep.subr.bf16.mxu0 0
    %1084 = vmatpush1.bf16.msra.mxu0 0
    %1085 = vmatprep.subr.bf16.mxu0 0
    %1086 = vmatpush1.bf16.msra.mxu0 0
    %1087 = vmatprep.subr.bf16.mxu0 0
    %1088 = vmatpush1.bf16.msra.mxu0 0
    %1089 = vmatprep.subr.bf16.mxu0 0
    %1090 = vmatpush1.bf16.msra.mxu0 0
    %1091 = vmatprep.subr.bf16.mxu0 0
    %1092 = vmatpush1.bf16.msra.mxu0 0
    %1093 = vmatprep.subr.bf16.mxu0 0
    %1094 = vmatpush1.bf16.msra.mxu0 0
    %1095 = vmatprep.subr.bf16.mxu0 0
    %1096 = vmatpush1.bf16.msra.mxu0 0
    %1097 = vmatprep.subr.bf16.mxu0 0
    %1098 = vmatpush1.bf16.msra.mxu0 0
    %1099 = vmatprep.mubr.bf16.mxu0 0
    %1100 = vmatmul.mubr.bf16.gmra.mrb[0].mxu0 %v993
    %v1101 = vpop.f32.mrb[0].mxu0
    %v1102 = vadd.f32 %v1017, %v1101
    %v1103 = vpop.f32.mrb[0].mxu0
    %v1104 = vpop.f32.mrb[0].mxu0
    %v1105 = vpop.f32.mrb[0].mxu0
    %1106 = vdwg.mxu0
    %v1107 = vmul.f32 %v1102, 0.5
    %v1108 = vmul.f32 %v1102, 0.044715
    %v1109 = vmul.f32 %v1108, %v1102
    %v1110 = vmul.f32 %v1109, %v1102
    %v1111 = vadd.f32 %v1102, %v1110
    %v1112 = vmul.f32 %v1111, 0.7978846
    %v1113 = vtanh.pop %v1112
    %v1114 = vadd.f32 %v1113, 1.0
    %v1115 = vmul.f32 %v1107, %v1114
    %v1116 = vadd.f32 %v1115, %v871
    %v1117 = vpack.c.bf16 %v1116, %v1116
    %s1118 = scalar_lea.vmem [#allocation13], 128
    %v1119 = vld [vmem:[%s1118] sm:$0xf]
    %v1120 = vld [vmem:[%s1118 + $0x4] sm:$0xf]
    %v1121 = vld [vmem:[%s1118 + $0x8] sm:$0xf]
    %v1122 = vld [vmem:[%s1118 + $0xc] sm:$0xf]
    %v1123 = vld [vmem:[%s1118 + $0x10] sm:$0xf]
    %v1124 = vld [vmem:[%s1118 + $0x14] sm:$0xf]
    %v1125 = vld [vmem:[%s1118 + $0x18] sm:$0xf]
    %v1126 = vld [vmem:[%s1118 + $0x1c] sm:$0xf]
    %v1127 = vld [vmem:[%s1118 + $0x20] sm:$0xf]
    %v1128 = vld [vmem:[%s1118 + $0x24] sm:$0xf]
    %v1129 = vld [vmem:[%s1118 + $0x28] sm:$0xf]
    %v1130 = vld [vmem:[%s1118 + $0x2c] sm:$0xf]
    %v1131 = vld [vmem:[%s1118 + $0x30] sm:$0xf]
    %v1132 = vld [vmem:[%s1118 + $0x34] sm:$0xf]
    %v1133 = vld [vmem:[%s1118 + $0x38] sm:$0xf]
    %v1134 = vld [vmem:[%s1118 + $0x3c] sm:$0xf]
    %s1135 = scalar_lea.vmem %s11, 2
    %v1136 = vld [vmem:[%s1135] sm:$0x1]
    %v1138 = vlaneseq
    %v1139 = vshrl.u32 %v1138, 7
    %v1140 = vsub.s32 0, %v1139
    %v1141 = vrot.slane %v1136, %v1140
    %v1159 = vunpack.c.l.b16 %v1119
    %v1160 = vunpack.c.l.b16 %v1120
    %v1161 = vunpack.c.l.b16 %v1121
    %v1162 = vunpack.c.l.b16 %v1122
    %v1163 = vunpack.c.l.b16 %v1123
    %v1164 = vunpack.c.l.b16 %v1124
    %v1165 = vunpack.c.l.b16 %v1125
    %v1166 = vunpack.c.l.b16 %v1126
    %v1167 = vunpack.c.l.b16 %v1127
    %v1168 = vunpack.c.l.b16 %v1128
    %v1169 = vunpack.c.l.b16 %v1129
    %v1170 = vunpack.c.l.b16 %v1130
    %v1171 = vunpack.c.l.b16 %v1131
    %v1172 = vunpack.c.l.b16 %v1132
    %v1173 = vunpack.c.l.b16 %v1133
    %v1174 = vunpack.c.l.b16 %v1134
    %v1175 = vpack.c.b16 %v1160, %v1159
    %v1176 = vpack.c.b16 %v1162, %v1161
    %v1177 = vpack.c.b16 %v1164, %v1163
    %v1178 = vpack.c.b16 %v1166, %v1165
    %v1179 = vpack.c.b16 %v1168, %v1167
    %v1180 = vpack.c.b16 %v1170, %v1169
    %v1181 = vpack.c.b16 %v1172, %v1171
    %v1182 = vpack.c.b16 %v1174, %v1173
    %1191 = vmatprep.subr.bf16.mxu0 0
    %1192 = vmatpush1.bf16.msra.mxu0 %v1175
    %1193 = vmatprep.subr.bf16.mxu0 0
    %1194 = vmatpush1.bf16.msra.mxu0 %v1176
    %1195 = vmatprep.subr.bf16.mxu0 0
    %1196 = vmatpush1.bf16.msra.mxu0 %v1177
    %1197 = vmatprep.subr.bf16.mxu0 0
    %1198 = vmatpush1.bf16.msra.mxu0 %v1178
    %1199 = vmatprep.subr.bf16.mxu0 0
    %1200 = vmatpush1.bf16.msra.mxu0 %v1179
    %1201 = vmatprep.subr.bf16.mxu0 0
    %1202 = vmatpush1.bf16.msra.mxu0 %v1180
    %1203 = vmatprep.subr.bf16.mxu0 0
    %1204 = vmatpush1.bf16.msra.mxu0 %v1181
    %1205 = vmatprep.subr.bf16.mxu0 0
    %1206 = vmatpush1.bf16.msra.mxu0 %v1182
    %1207 = vmatprep.subr.bf16.mxu0 0
    %1208 = vmatpush1.bf16.msra.mxu0 0
    %1209 = vmatprep.subr.bf16.mxu0 0
    %1210 = vmatpush1.bf16.msra.mxu0 0
    %1211 = vmatprep.subr.bf16.mxu0 0
    %1212 = vmatpush1.bf16.msra.mxu0 0
    %1213 = vmatprep.subr.bf16.mxu0 0
    %1214 = vmatpush1.bf16.msra.mxu0 0
    %1215 = vmatprep.subr.bf16.mxu0 0
    %1216 = vmatpush1.bf16.msra.mxu0 0
    %1217 = vmatprep.subr.bf16.mxu0 0
    %1218 = vmatpush1.bf16.msra.mxu0 0
    %1219 = vmatprep.subr.bf16.mxu0 0
    %1220 = vmatpush1.bf16.msra.mxu0 0
    %1221 = vmatprep.subr.bf16.mxu0 0
    %1222 = vmatpush1.bf16.msra.mxu0 0
    %1223 = vmatprep.mubr.bf16.mxu0 0
    %1224 = vmatmul.mubr.bf16.gmra.mrb[0].mxu0 %v1117
    %v1225 = vpop.f32.mrb[0].mxu0
    %v1226 = vadd.f32 %v1141, %v1225
    %v1227 = vpop.f32.mrb[0].mxu0
    %v1228 = vpop.f32.mrb[0].mxu0
    %v1229 = vpop.f32.mrb[0].mxu0
    %1230 = vdwg.mxu0
    %v1231 = vmul.f32 %v1226, 0.5
    %v1232 = vmul.f32 %v1226, 0.044715
    %v1233 = vmul.f32 %v1232, %v1226
    %v1234 = vmul.f32 %v1233, %v1226
    %v1235 = vadd.f32 %v1226, %v1234
    %v1236 = vmul.f32 %v1235, 0.7978846
    %v1237 = vtanh.pop %v1236
    %v1238 = vadd.f32 %v1237, 1.0
    %v1239 = vmul.f32 %v1231, %v1238
    %v1240 = vpack.c.bf16 %v1239, %v1239
    %s1241 = scalar_lea.vmem [#allocation13], 192
    %v1242 = vld [vmem:[%s1241] sm:$0xf]
    %v1243 = vld [vmem:[%s1241 + $0x4] sm:$0xf]
    %v1244 = vld [vmem:[%s1241 + $0x8] sm:$0xf]
    %v1245 = vld [vmem:[%s1241 + $0xc] sm:$0xf]
    %v1246 = vld [vmem:[%s1241 + $0x10] sm:$0xf]
    %v1247 = vld [vmem:[%s1241 + $0x14] sm:$0xf]
    %v1248 = vld [vmem:[%s1241 + $0x18] sm:$0xf]
    %v1249 = vld [vmem:[%s1241 + $0x1c] sm:$0xf]
    %v1250 = vld [vmem:[%s1241 + $0x20] sm:$0xf]
    %v1251 = vld [vmem:[%s1241 + $0x24] sm:$0xf]
    %v1252 = vld [vmem:[%s1241 + $0x28] sm:$0xf]
    %v1253 = vld [vmem:[%s1241 + $0x2c] sm:$0xf]
    %v1254 = vld [vmem:[%s1241 + $0x30] sm:$0xf]
    %v1255 = vld [vmem:[%s1241 + $0x34] sm:$0xf]
    %v1256 = vld [vmem:[%s1241 + $0x38] sm:$0xf]
    %v1257 = vld [vmem:[%s1241 + $0x3c] sm:$0xf]
    %s1258 = scalar_lea.vmem %s11, 3
    %v1259 = vld [vmem:[%s1258] sm:$0x1]
    %v1261 = vlaneseq
    %v1262 = vshrl.u32 %v1261, 7
    %v1263 = vsub.s32 0, %v1262
    %v1264 = vrot.slane %v1259, %v1263
    %v1282 = vunpack.c.l.b16 %v1242
    %v1283 = vunpack.c.l.b16 %v1243
    %v1284 = vunpack.c.l.b16 %v1244
    %v1285 = vunpack.c.l.b16 %v1245
    %v1286 = vunpack.c.l.b16 %v1246
    %v1287 = vunpack.c.l.b16 %v1247
    %v1288 = vunpack.c.l.b16 %v1248
    %v1289 = vunpack.c.l.b16 %v1249
    %v1290 = vunpack.c.l.b16 %v1250
    %v1291 = vunpack.c.l.b16 %v1251
    %v1292 = vunpack.c.l.b16 %v1252
    %v1293 = vunpack.c.l.b16 %v1253
    %v1294 = vunpack.c.l.b16 %v1254
    %v1295 = vunpack.c.l.b16 %v1255
    %v1296 = vunpack.c.l.b16 %v1256
    %v1297 = vunpack.c.l.b16 %v1257
    %v1298 = vpack.c.b16 %v1283, %v1282
    %v1299 = vpack.c.b16 %v1285, %v1284
    %v1300 = vpack.c.b16 %v1287, %v1286
    %v1301 = vpack.c.b16 %v1289, %v1288
    %v1302 = vpack.c.b16 %v1291, %v1290
    %v1303 = vpack.c.b16 %v1293, %v1292
    %v1304 = vpack.c.b16 %v1295, %v1294
    %v1305 = vpack.c.b16 %v1297, %v1296
    %1314 = vmatprep.subr.bf16.mxu0 0
    %1315 = vmatpush1.bf16.msra.mxu0 %v1298
    %1316 = vmatprep.subr.bf16.mxu0 0
    %1317 = vmatpush1.bf16.msra.mxu0 %v1299
    %1318 = vmatprep.subr.bf16.mxu0 0
    %1319 = vmatpush1.bf16.msra.mxu0 %v1300
    %1320 = vmatprep.subr.bf16.mxu0 0
    %1321 = vmatpush1.bf16.msra.mxu0 %v1301
    %1322 = vmatprep.subr.bf16.mxu0 0
    %1323 = vmatpush1.bf16.msra.mxu0 %v1302
    %1324 = vmatprep.subr.bf16.mxu0 0
    %1325 = vmatpush1.bf16.msra.mxu0 %v1303
    %1326 = vmatprep.subr.bf16.mxu0 0
    %1327 = vmatpush1.bf16.msra.mxu0 %v1304
    %1328 = vmatprep.subr.bf16.mxu0 0
    %1329 = vmatpush1.bf16.msra.mxu0 %v1305
    %1330 = vmatprep.subr.bf16.mxu0 0
    %1331 = vmatpush1.bf16.msra.mxu0 0
    %1332 = vmatprep.subr.bf16.mxu0 0
    %1333 = vmatpush1.bf16.msra.mxu0 0
    %1334 = vmatprep.subr.bf16.mxu0 0
    %1335 = vmatpush1.bf16.msra.mxu0 0
    %1336 = vmatprep.subr.bf16.mxu0 0
    %1337 = vmatpush1.bf16.msra.mxu0 0
    %1338 = vmatprep.subr.bf16.mxu0 0
    %1339 = vmatpush1.bf16.msra.mxu0 0
    %1340 = vmatprep.subr.bf16.mxu0 0
    %1341 = vmatpush1.bf16.msra.mxu0 0
    %1342 = vmatprep.subr.bf16.mxu0 0
    %1343 = vmatpush1.bf16.msra.mxu0 0
    %1344 = vmatprep.subr.bf16.mxu0 0
    %1345 = vmatpush1.bf16.msra.mxu0 0
    %1346 = vmatprep.mubr.bf16.mxu0 0
    %1347 = vmatmul.mubr.bf16.gmra.mrb[0].mxu0 %v1240
    %v1348 = vpop.f32.mrb[0].mxu0
    %v1349 = vadd.f32 %v1264, %v1348
    %v1350 = vpop.f32.mrb[0].mxu0
    %v1351 = vpop.f32.mrb[0].mxu0
    %v1352 = vpop.f32.mrb[0].mxu0
    %1353 = vdwg.mxu0
    %v1354 = vmul.f32 %v1349, 0.5
    %v1355 = vmul.f32 %v1349, 0.044715
    %v1356 = vmul.f32 %v1355, %v1349
    %v1357 = vmul.f32 %v1356, %v1349
    %v1358 = vadd.f32 %v1349, %v1357
    %v1359 = vmul.f32 %v1358, 0.7978846
    %v1360 = vtanh.pop %v1359
    %v1361 = vadd.f32 %v1360, 1.0
    %v1362 = vmul.f32 %v1354, %v1361
    %v1363 = vadd.f32 %v1362, %v1116
    %v1364 = vpack.c.bf16 %v1363, %v1363
    %v1365 = vld [vmem:[#allocation14] sm:$0xf]
    %v1366 = vld [vmem:[#allocation14 + $0x4] sm:$0xf]
    %v1367 = vld [vmem:[#allocation14 + $0x8] sm:$0xf]
    %v1368 = vld [vmem:[#allocation14 + $0xc] sm:$0xf]
    %v1369 = vld [vmem:[#allocation14 + $0x10] sm:$0xf]
    %v1370 = vld [vmem:[#allocation14 + $0x14] sm:$0xf]
    %v1371 = vld [vmem:[#allocation14 + $0x18] sm:$0xf]
    %v1372 = vld [vmem:[#allocation14 + $0x1c] sm:$0xf]
    %v1373 = vld [vmem:[#allocation14 + $0x20] sm:$0xf]
    %v1374 = vld [vmem:[#allocation14 + $0x24] sm:$0xf]
    %v1375 = vld [vmem:[#allocation14 + $0x28] sm:$0xf]
    %v1376 = vld [vmem:[#allocation14 + $0x2c] sm:$0xf]
    %v1377 = vld [vmem:[#allocation14 + $0x30] sm:$0xf]
    %v1378 = vld [vmem:[#allocation14 + $0x34] sm:$0xf]
    %v1379 = vld [vmem:[#allocation14 + $0x38] sm:$0xf]
    %v1380 = vld [vmem:[#allocation14 + $0x3c] sm:$0xf]
    %v1381 = vld [vmem:[%s13] sm:$0x1]
    %v1383 = vlaneseq
    %v1384 = vshrl.u32 %v1383, 7
    %v1385 = vsub.s32 0, %v1384
    %v1386 = vrot.slane %v1381, %v1385
    %v1404 = vunpack.c.l.b16 %v1365
    %v1405 = vunpack.c.l.b16 %v1366
    %v1406 = vunpack.c.l.b16 %v1367
    %v1407 = vunpack.c.l.b16 %v1368
    %v1408 = vunpack.c.l.b16 %v1369
    %v1409 = vunpack.c.l.b16 %v1370
    %v1410 = vunpack.c.l.b16 %v1371
    %v1411 = vunpack.c.l.b16 %v1372
    %v1412 = vunpack.c.l.b16 %v1373
    %v1413 = vunpack.c.l.b16 %v1374
    %v1414 = vunpack.c.l.b16 %v1375
    %v1415 = vunpack.c.l.b16 %v1376
    %v1416 = vunpack.c.l.b16 %v1377
    %v1417 = vunpack.c.l.b16 %v1378
    %v1418 = vunpack.c.l.b16 %v1379
    %v1419 = vunpack.c.l.b16 %v1380
    %v1420 = vpack.c.b16 %v1405, %v1404
    %v1421 = vpack.c.b16 %v1407, %v1406
    %v1422 = vpack.c.b16 %v1409, %v1408
    %v1423 = vpack.c.b16 %v1411, %v1410
    %v1424 = vpack.c.b16 %v1413, %v1412
    %v1425 = vpack.c.b16 %v1415, %v1414
    %v1426 = vpack.c.b16 %v1417, %v1416
    %v1427 = vpack.c.b16 %v1419, %v1418
    %1436 = vmatprep.subr.bf16.mxu0 0
    %1437 = vmatpush1.bf16.msra.mxu0 %v1420
    %1438 = vmatprep.subr.bf16.mxu0 0
    %1439 = vmatpush1.bf16.msra.mxu0 %v1421
    %1440 = vmatprep.subr.bf16.mxu0 0
    %1441 = vmatpush1.bf16.msra.mxu0 %v1422
    %1442 = vmatprep.subr.bf16.mxu0 0
    %1443 = vmatpush1.bf16.msra.mxu0 %v1423
    %1444 = vmatprep.subr.bf16.mxu0 0
    %1445 = vmatpush1.bf16.msra.mxu0 %v1424
    %1446 = vmatprep.subr.bf16.mxu0 0
    %1447 = vmatpush1.bf16.msra.mxu0 %v1425
    %1448 = vmatprep.subr.bf16.mxu0 0
    %1449 = vmatpush1.bf16.msra.mxu0 %v1426
    %1450 = vmatprep.subr.bf16.mxu0 0
    %1451 = vmatpush1.bf16.msra.mxu0 %v1427
    %1452 = vmatprep.subr.bf16.mxu0 0
    %1453 = vmatpush1.bf16.msra.mxu0 0
    %1454 = vmatprep.subr.bf16.mxu0 0
    %1455 = vmatpush1.bf16.msra.mxu0 0
    %1456 = vmatprep.subr.bf16.mxu0 0
    %1457 = vmatpush1.bf16.msra.mxu0 0
    %1458 = vmatprep.subr.bf16.mxu0 0
    %1459 = vmatpush1.bf16.msra.mxu0 0
    %1460 = vmatprep.subr.bf16.mxu0 0
    %1461 = vmatpush1.bf16.msra.mxu0 0
    %1462 = vmatprep.subr.bf16.mxu0 0
    %1463 = vmatpush1.bf16.msra.mxu0 0
    %1464 = vmatprep.subr.bf16.mxu0 0
    %1465 = vmatpush1.bf16.msra.mxu0 0
    %1466 = vmatprep.subr.bf16.mxu0 0
    %1467 = vmatpush1.bf16.msra.mxu0 0
    %1468 = vmatprep.mubr.bf16.mxu0 0
    %1469 = vmatmul.mubr.bf16.gmra.mrb[0].mxu0 %v1364
    %v1470 = vpop.f32.mrb[0].mxu0
    %v1471 = vadd.f32 %v1386, %v1470
    %v1472 = vpop.f32.mrb[0].mxu0
    %v1473 = vpop.f32.mrb[0].mxu0
    %v1474 = vpop.f32.mrb[0].mxu0
    %1475 = vdwg.mxu0
    %1476 = vst [vmem:[#allocation16] sm:$0xff] %v1471
    // Predicated region
    $region90: #{tpu_custom_call.1} parent=1 // pred_check
      _
    $region91: #{tpu_custom_call.1} parent=1 // pred_check_branch
      %1478 = sbr.rel (0) target = $region93
    $region92: #{tpu_custom_call.1} parent=1 // pred_region
      %s1480 = ssub.s32 128, 128
      %1481 = vsyncadd [#allocation4], %s1480
      %s1483 = sshll.u32 [#allocation16], 4
      %s1484 = int_to_ptr.vmem [resolvable:$true] %s1483
      %1486 = dma.vmem_to_hbm [thread:$0]  %s1484, 128, %s14, [#allocation4]
    $region93: #{tpu_custom_call.1} parent=1 // pred_fallthru
      _
    // Predicated region
    $region94: #{tpu_custom_call.1} parent=1 // pred_check
      _
    $region95: #{tpu_custom_call.1} parent=1 // pred_check_branch
      %1488 = sbr.rel (0) target = $region97
    $region96: #{tpu_custom_call.1} parent=1 // pred_region
      %1489 = dma.done [#allocation4], 128
    $region97: #{tpu_custom_call.1} parent=1 // pred_fallthru
      _
    %1490 = vsyncpa [#allocation3], 1
    %1491 = vsyncpa [#allocation6], 1
    %1492 = vsyncpa [#allocation9], 1
    %1493 = vsyncpa [#allocation12], 1
    %1494 = vsyncpa [#allocation15], 1
    %1495 = vsyncpa [#allocation4], 1

</llo_original>
